<compile_context>
chip_gen: v7x
topology: tpu7x:2x2x1
jax: 0.10.0
libtpu: 0.0.40
codegen_flags: <defaults>
</compile_context>

<pallas_src>
import jax
import jax.numpy as jnp
from jax.experimental import pallas as pl
from jax.experimental.pallas import tpu as pltpu

_UNROLL = 8  # issue-loop unroll factor


def _round_up(x, m):
    return (x + m - 1) // m * m


# ----------------------------------------------------------------------------
# Kernels
# ----------------------------------------------------------------------------
def _make_split_kernel(tile, h):
    """Gather into two (2*tile, H) buffers; out = xs@W[:H] + xe@W[H:] + b."""

    def kernel(sidx_ref, eidx_ref,            # SMEM [n_pad] int32 (prefetch)
               text_ref,                      # HBM  [B*T, H]   (pl.ANY)
               ws_ref, we_ref, b_ref,         # VMEM [H,Dp],[H,Dp],[1,Dp]
               out_ref,                       # VMEM [tile, Dp]
               sbuf, ebuf, sem):              # VMEM [2*tile,H] x2, DMA sem (2,2)
        t = pl.program_id(0)
        nt = pl.num_programs(0)
        slot = t & 1

        def issue(tile_idx, s):
            base = tile_idx * tile
            dst0 = s * tile

            @pl.loop(0, tile // _UNROLL)
            def _(i):
                for u in range(_UNROLL):        # partial unroll (trace-time)
                    n = i * _UNROLL + u
                    srow = sidx_ref[base + n]
                    erow = eidx_ref[base + n]
                    pltpu.make_async_copy(
                        text_ref.at[pl.ds(srow, 1)],
                        sbuf.at[pl.ds(dst0 + n, 1)],
                        sem.at[0, s]).start()
                    pltpu.make_async_copy(
                        text_ref.at[pl.ds(erow, 1)],
                        ebuf.at[pl.ds(dst0 + n, 1)],
                        sem.at[1, s]).start()

        # Prime slot 0 on the first grid step.
        @pl.when(t == 0)
        def _prime():
            issue(0, 0)

        # Prefetch next tile's rows into the other slot BEFORE waiting.
        @pl.when(t + 1 < nt)
        def _prefetch_next():
            issue(t + 1, (t + 1) & 1)

        # One wait per buffer: `tile` identical 1-row copies of H*itemsize
        # bytes sum to exactly one (tile, H) slot.
        row0 = pl.multiple_of(slot * tile, 8)
        pltpu.make_async_copy(text_ref.at[pl.ds(0, tile)],
                              sbuf.at[pl.ds(row0, tile)],
                              sem.at[0, slot]).wait()
        pltpu.make_async_copy(text_ref.at[pl.ds(0, tile)],
                              ebuf.at[pl.ds(row0, tile)],
                              sem.at[1, slot]).wait()

        xs = sbuf[pl.ds(row0, tile), :]
        xe = ebuf[pl.ds(row0, tile), :]
        acc = jnp.dot(xs, ws_ref[...], preferred_element_type=jnp.float32)
        acc = acc + jnp.dot(xe, we_ref[...], preferred_element_type=jnp.float32)
        acc = acc + b_ref[...].astype(jnp.float32)
        out_ref[...] = acc.astype(out_ref.dtype)

    return kernel


def _make_merged_kernel(tile, h):
    """H % 128 == 0: gather into one (2*tile, 2H) buffer; single dot vs W."""

    def kernel(sidx_ref, eidx_ref,            # SMEM [n_pad] int32 (prefetch)
               text_ref,                      # HBM  [B*T, H]   (pl.ANY)
               w_ref, b_ref,                  # VMEM [2H, Dp], [1, Dp]
               out_ref,                       # VMEM [tile, Dp]
               cbuf, sem):                    # VMEM [2*tile, 2H], DMA sem (2,2)
        t = pl.program_id(0)
        nt = pl.num_programs(0)
        slot = t & 1

        def issue(tile_idx, s):
            base = tile_idx * tile
            dst0 = s * tile

            @pl.loop(0, tile // _UNROLL)
            def _(i):
                for u in range(_UNROLL):
                    n = i * _UNROLL + u
                    srow = sidx_ref[base + n]
                    erow = eidx_ref[base + n]
                    pltpu.make_async_copy(
                        text_ref.at[pl.ds(srow, 1)],
                        cbuf.at[pl.ds(dst0 + n, 1), pl.ds(0, h)],
                        sem.at[0, s]).start()
                    pltpu.make_async_copy(
                        text_ref.at[pl.ds(erow, 1)],
                        cbuf.at[pl.ds(dst0 + n, 1), pl.ds(h, h)],
                        sem.at[1, s]).start()

        @pl.when(t == 0)
        def _prime():
            issue(0, 0)

        @pl.when(t + 1 < nt)
        def _prefetch_next():
            issue(t + 1, (t + 1) & 1)

        row0 = pl.multiple_of(slot * tile, 8)
        pltpu.make_async_copy(text_ref.at[pl.ds(0, tile)],
                              cbuf.at[pl.ds(row0, tile), pl.ds(0, h)],
                              sem.at[0, slot]).wait()
        pltpu.make_async_copy(text_ref.at[pl.ds(0, tile)],
                              cbuf.at[pl.ds(row0, tile), pl.ds(h, h)],
                              sem.at[1, slot]).wait()

        x = cbuf[pl.ds(row0, tile), :]                  # (tile, 2H) "concat"
        acc = jnp.dot(x, w_ref[...], preferred_element_type=jnp.float32)
        acc = acc + b_ref[...].astype(jnp.float32)
        out_ref[...] = acc.astype(out_ref.dtype)

    return kernel


# ----------------------------------------------------------------------------
# Wrapper
# ----------------------------------------------------------------------------
def span_encoder(text_encodings, mention_offsets, mention_lengths,
                 weight, bias, *, tile_bm=256, use_bf16=False, out_dtype=None):
    """Pallas implementation of SpanEncoder.forward (mention_aggregation='linear').

    text_encodings: (B, T, H), mention_offsets/lengths: (B, M) int,
    weight: (2H, D), bias: (D,).  Returns (B, M, D).
    """
    B, T, H = text_encodings.shape
    M = mention_offsets.shape[1]
    D = weight.shape[1]
    assert weight.shape[0] == 2 * H
    assert tile_bm >= 8 and tile_bm % 8 == 0

    # Output precision: defaults to the ORIGINAL activation dtype (PyTorch
    # Linear with f32 params would return f32; pass out_dtype=jnp.float32 to
    # force that when feeding bf16 activations).
    if out_dtype is None:
        out_dtype = text_encodings.dtype
    if use_bf16:
        text_encodings = text_encodings.astype(jnp.bfloat16)
        weight = weight.astype(jnp.bfloat16)    # bias stays f32 (added in f32)

    N = B * M
    tile = min(tile_bm, _round_up(N, 8))        # mention rows per grid step
    d_pad = _round_up(D, 128)                   # lane-dense output stores

    x_it = jnp.dtype(text_encodings.dtype).itemsize
    w_it = jnp.dtype(weight.dtype).itemsize
    o_it = jnp.dtype(out_dtype).itemsize

    def vmem_need(t):
        gather = 2 * t * 2 * H * x_it           # 2 slots x (start + end) rows
        wmem = 2 * H * d_pad * w_it * 2         # resident weight (2-buffered)
        bmem = 8 * d_pad * 4 * 2                # bias tile (padded sublanes)
        obuf = 2 * t * d_pad * o_it             # double-buffered output window
        return gather + wmem + bmem + obuf

    # Keep the footprint v7x-safe (64 MiB physical VMEM per TensorCore) and
    # keep the whole-slot fake-wait descriptor (tile rows of text) in bounds.
    while tile > 8 and (vmem_need(tile) > 40 * (1 << 20) or tile > B * T):
        tile = max(8, _round_up(tile // 2, 8))
    assert tile <= B * T, "tile exceeds B*T; lower tile_bm"

    n_pad = _round_up(N, tile)

    # ---- Flatten mentions across batch; torch-style negative-index wrap. ---
    off = mention_offsets.astype(jnp.int32)
    ln = mention_lengths.astype(jnp.int32)
    starts = jnp.clip(off, 0, T - 1)
    ends = off + ln - 1
    ends = jnp.where(ends < 0, ends + T, ends)  # length-0 wrap (torch semantics)
    ends = jnp.clip(ends, 0, T - 1)             # padded mentions: safe rows

    batch_base = (jnp.arange(B, dtype=jnp.int32) * T)[:, None]
    sidx = (batch_base + starts).reshape(-1)
    eidx = (batch_base + ends).reshape(-1)
    pad_rows = n_pad - N
    if pad_rows:
        zpad = jnp.zeros((pad_rows,), jnp.int32)
        sidx = jnp.concatenate([sidx, zpad])
        eidx = jnp.concatenate([eidx, zpad])

    # ---- Pad output lane dim; prepare weights / bias. -----------------------
    w = weight if d_pad == D else jnp.pad(weight, ((0, 0), (0, d_pad - D)))
    b = bias.astype(jnp.float32)
    b = b if d_pad == D else jnp.pad(b, ((0, d_pad - D),))
    b2 = b.reshape(1, d_pad)
    text_flat = text_encodings.reshape(B * T, H)

    merged = (H % 128 == 0)
    if merged:
        kernel = _make_merged_kernel(tile, H)
        in_specs = [
            pl.BlockSpec(memory_space=pl.ANY),                        # text rows in HBM
            pl.BlockSpec((2 * H, d_pad), lambda t, s, e: (0, 0)),     # W (resident)
            pl.BlockSpec((1, d_pad), lambda t, s, e: (0, 0)),         # bias
        ]
        scratch_shapes = [
            pltpu.VMEM((2 * tile, 2 * H), text_flat.dtype),           # 2-slot gather
            pltpu.SemaphoreType.DMA((2, 2)),
        ]
        operands = (sidx, eidx, text_flat, w, b2)
    else:
        kernel = _make_split_kernel(tile, H)
        in_specs = [
            pl.BlockSpec(memory_space=pl.ANY),                        # text rows in HBM
            pl.BlockSpec((H, d_pad), lambda t, s, e: (0, 0)),         # W[:H]
            pl.BlockSpec((H, d_pad), lambda t, s, e: (0, 0)),         # W[H:]
            pl.BlockSpec((1, d_pad), lambda t, s, e: (0, 0)),         # bias
        ]
        scratch_shapes = [
            pltpu.VMEM((2 * tile, H), text_flat.dtype),               # start rows (2 slots)
            pltpu.VMEM((2 * tile, H), text_flat.dtype),               # end rows   (2 slots)
            pltpu.SemaphoreType.DMA((2, 2)),
        ]
        operands = (sidx, eidx, text_flat, w[:H], w[H:], b2)

    vmem_limit = min(max(int(vmem_need(tile) * 1.4), 32 << 20), 64 << 20)

    grid_spec = pltpu.PrefetchScalarGridSpec(
        num_scalar_prefetch=2,                  # flat start / end row indices -> SMEM
        grid=(n_pad // tile,),
        in_specs=in_specs,
        out_specs=pl.BlockSpec((tile, d_pad), lambda t, s, e: (t, 0)),
        scratch_shapes=scratch_shapes,
    )

    out = pl.pallas_call(
        kernel,
        grid_spec=grid_spec,
        out_shape=jax.ShapeDtypeStruct((n_pad, d_pad), out_dtype),
        compiler_params=pltpu.CompilerParams(
            # Cross-tile double-buffering carries DMA/semaphore state across
            # grid steps -> the axis must run sequentially on one core.
            dimension_semantics=("arbitrary",),
            vmem_limit_bytes=vmem_limit,
        ),
    )(*operands)

    return out[:N, :D].reshape(B, M, D)


def span_encoder_reference(text_encodings, mention_offsets, mention_lengths,
                           weight, bias):
    """Pure-JAX re-implementation of the PyTorch forward for verification."""
    B = mention_offsets.shape[0]
    idx = jnp.arange(B)[:, None]
    starts = text_encodings[idx, mention_offsets]
    ends = text_encodings[idx, mention_lengths + mention_offsets - 1]
    emb = jnp.concatenate([starts, ends], axis=2)
    return emb @ weight + bias


if __name__ == "__main__":
    def run_case(B, T, H, M, D, tile_bm, seed):
        key = jax.random.PRNGKey(seed)
        k_text, k_w, k_b, k_off, k_len = jax.random.split(key, 5)
        text = jax.random.normal(k_text, (B, T, H), dtype=jnp.float32)
        weight = (jax.random.normal(k_w, (2 * H, D), dtype=jnp.float32)
                  * (1.0 / jnp.sqrt(2.0 * H)))
        bias = jax.random.normal(k_b, (D,), dtype=jnp.float32) * 0.01
        # Spans fully inside the sequence: offset + length - 1 < T.
        m_off = jax.random.randint(k_off, (B, M), 0, T - 3, dtype=jnp.int32)
        m_len = jax.random.randint(k_len, (B, M), 1, 4, dtype=jnp.int32)

        out = span_encoder(text, m_off, m_len, weight, bias, tile_bm=tile_bm)
        out = jax.block_until_ready(out)

        ref = span_encoder_reference(text, m_off, m_len, weight, bias)
        assert out.shape == (B, M, D)
        assert jnp.allclose(out, ref, rtol=1e-4, atol=1e-4), (
            "mismatch vs reference, max err "
            f"{float(jnp.max(jnp.abs(out - ref)))}")

    # Split-weight path (H % 128 != 0), multiple tiles -> exercises the
    # cross-tile double-buffered gather (prime + prefetch, both slots).
    run_case(B=2, T=16, H=32, M=8, D=32, tile_bm=8, seed=0)
    # Merged path (H % 128 == 0): single (tile, 2H) @ (2H, Dp) matmul,
    # three tiles -> both slots reused.
    run_case(B=2, T=16, H=128, M=12, D=64, tile_bm=8, seed=1)

    print("KERNEL_OK")
</pallas_src>

<mosaic_0001>
module attributes {stable_mosaic.version = 11 : i64} {
  func.func @kernel(%arg0: i32, %arg1: memref<16xi32, #tpu.memory_space<smem>>, %arg2: memref<16xi32, #tpu.memory_space<smem>>, %arg3: memref<32x32xf32, #tpu.memory_space<any>>, %arg4: memref<32x128xf32, #tpu.memory_space<vmem>>, %arg5: memref<32x128xf32, #tpu.memory_space<vmem>>, %arg6: memref<1x128xf32, #tpu.memory_space<vmem>>, %arg7: memref<8x128xf32, #tpu.memory_space<vmem>>, %arg8: memref<16x32xf32, #tpu.memory_space<vmem>>, %arg9: memref<16x32xf32, #tpu.memory_space<vmem>>, %arg10: memref<2x2x!tpu.dma_semaphore, #tpu.memory_space<semaphore_mem>>) attributes {dimension_semantics = [#tpu.dimension_semantics<arbitrary>], iteration_bounds = array<i64: 2>, scalar_prefetch = 2 : i64, scratch_operands = 3 : i64, tpu.core_type = #tpu.core_type<tc>, window_params = [{}, {pipeline_mode = #tpu.pipeline_mode<synchronous>, transform_indices = @transform_1, window_bounds = array<i64: 32, 128>}, {pipeline_mode = #tpu.pipeline_mode<synchronous>, transform_indices = @transform_2, window_bounds = array<i64: 32, 128>}, {pipeline_mode = #tpu.pipeline_mode<synchronous>, transform_indices = @transform_3, window_bounds = array<i64: 1, 128>}, {transform_indices = @transform_4, window_bounds = array<i64: 8, 128>}]} {
    %c1_i32 = arith.constant 1 : i32
    %0 = arith.andi %arg0, %c1_i32 : i32
    %c0_i32 = arith.constant 0 : i32
    %1 = arith.cmpi eq, %arg0, %c0_i32 : i32
    %2 = arith.extui %1 : i1 to i32
    %c0_i32_0 = arith.constant 0 : i32
    %3 = arith.cmpi ne, %2, %c0_i32_0 : i32
    scf.if %3 {
      %c0_i32_21 = arith.constant 0 : i32
      %c1_i32_22 = arith.constant 1 : i32
      %31 = arith.muli %c0_i32_21, %c1_i32_22 : i32
      %c0_i32_23 = arith.constant 0 : i32
      %32 = arith.addi %c0_i32_23, %31 : i32
      %c8_i32_24 = arith.constant 8 : i32
      %33 = arith.muli %32, %c8_i32_24 : i32
      %c0_i32_25 = arith.constant 0 : i32
      %34 = arith.addi %33, %c0_i32_25 : i32
      %c0_i32_26 = arith.constant 0 : i32
      %35 = arith.addi %c0_i32_26, %34 : i32
      %36 = arith.index_cast %35 : i32 to index
      %37 = memref.load %arg1[%36] : memref<16xi32, #tpu.memory_space<smem>>
      %c0_i32_27 = arith.constant 0 : i32
      %38 = arith.addi %c0_i32_27, %34 : i32
      %39 = arith.index_cast %38 : i32 to index
      %40 = memref.load %arg2[%39] : memref<16xi32, #tpu.memory_space<smem>>
      %c0_i32_28 = arith.constant 0 : i32
      %41 = arith.addi %c0_i32_28, %34 : i32
      %c0_i32_29 = arith.constant 0 : i32
      %c0_i32_30 = arith.constant 0 : i32
      %c0_i32_31 = arith.constant 0 : i32
      %42 = tpu.memref_slice %arg3[%37, %c0_i32_31] : memref<32x32xf32, #tpu.memory_space<any>> -> memref<1x32xf32, #tpu.memory_space<any>>
      %c0_i32_32 = arith.constant 0 : i32
      %43 = tpu.memref_slice %arg8[%41, %c0_i32_32] : memref<16x32xf32, #tpu.memory_space<vmem>> -> memref<1x32xf32, #tpu.memory_space<vmem>>
      %44 = tpu.memref_slice %arg10[%c0_i32_29, %c0_i32_30] : memref<2x2x!tpu.dma_semaphore, #tpu.memory_space<semaphore_mem>> -> memref<1x1x!tpu.dma_semaphore, #tpu.memory_space<semaphore_mem>>
      %45 = tpu.memref_squeeze %44 : memref<1x1x!tpu.dma_semaphore, #tpu.memory_space<semaphore_mem>> -> memref<!tpu.dma_semaphore, #tpu.memory_space<semaphore_mem>>
      tpu.enqueue_dma source(%42 : memref<1x32xf32, #tpu.memory_space<any>>) target(%43 : memref<1x32xf32, #tpu.memory_space<vmem>>) target_semaphore(%45 : memref<!tpu.dma_semaphore, #tpu.memory_space<semaphore_mem>>)
      %c0_i32_33 = arith.constant 0 : i32
      %46 = arith.addi %c0_i32_33, %34 : i32
      %c1_i32_34 = arith.constant 1 : i32
      %c0_i32_35 = arith.constant 0 : i32
      %c0_i32_36 = arith.constant 0 : i32
      %47 = tpu.memref_slice %arg3[%40, %c0_i32_36] : memref<32x32xf32, #tpu.memory_space<any>> -> memref<1x32xf32, #tpu.memory_space<any>>
      %c0_i32_37 = arith.constant 0 : i32
      %48 = tpu.memref_slice %arg9[%46, %c0_i32_37] : memref<16x32xf32, #tpu.memory_space<vmem>> -> memref<1x32xf32, #tpu.memory_space<vmem>>
      %49 = tpu.memref_slice %arg10[%c1_i32_34, %c0_i32_35] : memref<2x2x!tpu.dma_semaphore, #tpu.memory_space<semaphore_mem>> -> memref<1x1x!tpu.dma_semaphore, #tpu.memory_space<semaphore_mem>>
      %50 = tpu.memref_squeeze %49 : memref<1x1x!tpu.dma_semaphore, #tpu.memory_space<semaphore_mem>> -> memref<!tpu.dma_semaphore, #tpu.memory_space<semaphore_mem>>
      tpu.enqueue_dma source(%47 : memref<1x32xf32, #tpu.memory_space<any>>) target(%48 : memref<1x32xf32, #tpu.memory_space<vmem>>) target_semaphore(%50 : memref<!tpu.dma_semaphore, #tpu.memory_space<semaphore_mem>>)
      %c8_i32_38 = arith.constant 8 : i32
      %51 = arith.muli %32, %c8_i32_38 : i32
      %c1_i32_39 = arith.constant 1 : i32
      %52 = arith.addi %51, %c1_i32_39 : i32
      %c0_i32_40 = arith.constant 0 : i32
      %53 = arith.addi %c0_i32_40, %52 : i32
      %54 = arith.index_cast %53 : i32 to index
      %55 = memref.load %arg1[%54] : memref<16xi32, #tpu.memory_space<smem>>
      %c0_i32_41 = arith.constant 0 : i32
      %56 = arith.addi %c0_i32_41, %52 : i32
      %57 = arith.index_cast %56 : i32 to index
      %58 = memref.load %arg2[%57] : memref<16xi32, #tpu.memory_space<smem>>
      %c0_i32_42 = arith.constant 0 : i32
      %59 = arith.addi %c0_i32_42, %52 : i32
      %c0_i32_43 = arith.constant 0 : i32
      %c0_i32_44 = arith.constant 0 : i32
      %c0_i32_45 = arith.constant 0 : i32
      %60 = tpu.memref_slice %arg3[%55, %c0_i32_45] : memref<32x32xf32, #tpu.memory_space<any>> -> memref<1x32xf32, #tpu.memory_space<any>>
      %c0_i32_46 = arith.constant 0 : i32
      %61 = tpu.memref_slice %arg8[%59, %c0_i32_46] : memref<16x32xf32, #tpu.memory_space<vmem>> -> memref<1x32xf32, #tpu.memory_space<vmem>>
      %62 = tpu.memref_slice %arg10[%c0_i32_43, %c0_i32_44] : memref<2x2x!tpu.dma_semaphore, #tpu.memory_space<semaphore_mem>> -> memref<1x1x!tpu.dma_semaphore, #tpu.memory_space<semaphore_mem>>
      %63 = tpu.memref_squeeze %62 : memref<1x1x!tpu.dma_semaphore, #tpu.memory_space<semaphore_mem>> -> memref<!tpu.dma_semaphore, #tpu.memory_space<semaphore_mem>>
      tpu.enqueue_dma source(%60 : memref<1x32xf32, #tpu.memory_space<any>>) target(%61 : memref<1x32xf32, #tpu.memory_space<vmem>>) target_semaphore(%63 : memref<!tpu.dma_semaphore, #tpu.memory_space<semaphore_mem>>)
      %c0_i32_47 = arith.constant 0 : i32
      %64 = arith.addi %c0_i32_47, %52 : i32
      %c1_i32_48 = arith.constant 1 : i32
      %c0_i32_49 = arith.constant 0 : i32
      %c0_i32_50 = arith.constant 0 : i32
      %65 = tpu.memref_slice %arg3[%58, %c0_i32_50] : memref<32x32xf32, #tpu.memory_space<any>> -> memref<1x32xf32, #tpu.memory_space<any>>
      %c0_i32_51 = arith.constant 0 : i32
      %66 = tpu.memref_slice %arg9[%64, %c0_i32_51] : memref<16x32xf32, #tpu.memory_space<vmem>> -> memref<1x32xf32, #tpu.memory_space<vmem>>
      %67 = tpu.memref_slice %arg10[%c1_i32_48, %c0_i32_49] : memref<2x2x!tpu.dma_semaphore, #tpu.memory_space<semaphore_mem>> -> memref<1x1x!tpu.dma_semaphore, #tpu.memory_space<semaphore_mem>>
      %68 = tpu.memref_squeeze %67 : memref<1x1x!tpu.dma_semaphore, #tpu.memory_space<semaphore_mem>> -> memref<!tpu.dma_semaphore, #tpu.memory_space<semaphore_mem>>
      tpu.enqueue_dma source(%65 : memref<1x32xf32, #tpu.memory_space<any>>) target(%66 : memref<1x32xf32, #tpu.memory_space<vmem>>) target_semaphore(%68 : memref<!tpu.dma_semaphore, #tpu.memory_space<semaphore_mem>>)
      %c8_i32_52 = arith.constant 8 : i32
      %69 = arith.muli %32, %c8_i32_52 : i32
      %c2_i32_53 = arith.constant 2 : i32
      %70 = arith.addi %69, %c2_i32_53 : i32
      %c0_i32_54 = arith.constant 0 : i32
      %71 = arith.addi %c0_i32_54, %70 : i32
      %72 = arith.index_cast %71 : i32 to index
      %73 = memref.load %arg1[%72] : memref<16xi32, #tpu.memory_space<smem>>
      %c0_i32_55 = arith.constant 0 : i32
      %74 = arith.addi %c0_i32_55, %70 : i32
      %75 = arith.index_cast %74 : i32 to index
      %76 = memref.load %arg2[%75] : memref<16xi32, #tpu.memory_space<smem>>
      %c0_i32_56 = arith.constant 0 : i32
      %77 = arith.addi %c0_i32_56, %70 : i32
      %c0_i32_57 = arith.constant 0 : i32
      %c0_i32_58 = arith.constant 0 : i32
      %c0_i32_59 = arith.constant 0 : i32
      %78 = tpu.memref_slice %arg3[%73, %c0_i32_59] : memref<32x32xf32, #tpu.memory_space<any>> -> memref<1x32xf32, #tpu.memory_space<any>>
      %c0_i32_60 = arith.constant 0 : i32
      %79 = tpu.memref_slice %arg8[%77, %c0_i32_60] : memref<16x32xf32, #tpu.memory_space<vmem>> -> memref<1x32xf32, #tpu.memory_space<vmem>>
      %80 = tpu.memref_slice %arg10[%c0_i32_57, %c0_i32_58] : memref<2x2x!tpu.dma_semaphore, #tpu.memory_space<semaphore_mem>> -> memref<1x1x!tpu.dma_semaphore, #tpu.memory_space<semaphore_mem>>
      %81 = tpu.memref_squeeze %80 : memref<1x1x!tpu.dma_semaphore, #tpu.memory_space<semaphore_mem>> -> memref<!tpu.dma_semaphore, #tpu.memory_space<semaphore_mem>>
      tpu.enqueue_dma source(%78 : memref<1x32xf32, #tpu.memory_space<any>>) target(%79 : memref<1x32xf32, #tpu.memory_space<vmem>>) target_semaphore(%81 : memref<!tpu.dma_semaphore, #tpu.memory_space<semaphore_mem>>)
      %c0_i32_61 = arith.constant 0 : i32
      %82 = arith.addi %c0_i32_61, %70 : i32
      %c1_i32_62 = arith.constant 1 : i32
      %c0_i32_63 = arith.constant 0 : i32
      %c0_i32_64 = arith.constant 0 : i32
      %83 = tpu.memref_slice %arg3[%76, %c0_i32_64] : memref<32x32xf32, #tpu.memory_space<any>> -> memref<1x32xf32, #tpu.memory_space<any>>
      %c0_i32_65 = arith.constant 0 : i32
      %84 = tpu.memref_slice %arg9[%82, %c0_i32_65] : memref<16x32xf32, #tpu.memory_space<vmem>> -> memref<1x32xf32, #tpu.memory_space<vmem>>
      %85 = tpu.memref_slice %arg10[%c1_i32_62, %c0_i32_63] : memref<2x2x!tpu.dma_semaphore, #tpu.memory_space<semaphore_mem>> -> memref<1x1x!tpu.dma_semaphore, #tpu.memory_space<semaphore_mem>>
      %86 = tpu.memref_squeeze %85 : memref<1x1x!tpu.dma_semaphore, #tpu.memory_space<semaphore_mem>> -> memref<!tpu.dma_semaphore, #tpu.memory_space<semaphore_mem>>
      tpu.enqueue_dma source(%83 : memref<1x32xf32, #tpu.memory_space<any>>) target(%84 : memref<1x32xf32, #tpu.memory_space<vmem>>) target_semaphore(%86 : memref<!tpu.dma_semaphore, #tpu.memory_space<semaphore_mem>>)
      %c8_i32_66 = arith.constant 8 : i32
      %87 = arith.muli %32, %c8_i32_66 : i32
      %c3_i32 = arith.constant 3 : i32
      %88 = arith.addi %87, %c3_i32 : i32
      %c0_i32_67 = arith.constant 0 : i32
      %89 = arith.addi %c0_i32_67, %88 : i32
      %90 = arith.index_cast %89 : i32 to index
      %91 = memref.load %arg1[%90] : memref<16xi32, #tpu.memory_space<smem>>
      %c0_i32_68 = arith.constant 0 : i32
      %92 = arith.addi %c0_i32_68, %88 : i32
      %93 = arith.index_cast %92 : i32 to index
      %94 = memref.load %arg2[%93] : memref<16xi32, #tpu.memory_space<smem>>
      %c0_i32_69 = arith.constant 0 : i32
      %95 = arith.addi %c0_i32_69, %88 : i32
      %c0_i32_70 = arith.constant 0 : i32
      %c0_i32_71 = arith.constant 0 : i32
      %c0_i32_72 = arith.constant 0 : i32
      %96 = tpu.memref_slice %arg3[%91, %c0_i32_72] : memref<32x32xf32, #tpu.memory_space<any>> -> memref<1x32xf32, #tpu.memory_space<any>>
      %c0_i32_73 = arith.constant 0 : i32
      %97 = tpu.memref_slice %arg8[%95, %c0_i32_73] : memref<16x32xf32, #tpu.memory_space<vmem>> -> memref<1x32xf32, #tpu.memory_space<vmem>>
      %98 = tpu.memref_slice %arg10[%c0_i32_70, %c0_i32_71] : memref<2x2x!tpu.dma_semaphore, #tpu.memory_space<semaphore_mem>> -> memref<1x1x!tpu.dma_semaphore, #tpu.memory_space<semaphore_mem>>
      %99 = tpu.memref_squeeze %98 : memref<1x1x!tpu.dma_semaphore, #tpu.memory_space<semaphore_mem>> -> memref<!tpu.dma_semaphore, #tpu.memory_space<semaphore_mem>>
      tpu.enqueue_dma source(%96 : memref<1x32xf32, #tpu.memory_space<any>>) target(%97 : memref<1x32xf32, #tpu.memory_space<vmem>>) target_semaphore(%99 : memref<!tpu.dma_semaphore, #tpu.memory_space<semaphore_mem>>)
      %c0_i32_74 = arith.constant 0 : i32
      %100 = arith.addi %c0_i32_74, %88 : i32
      %c1_i32_75 = arith.constant 1 : i32
      %c0_i32_76 = arith.constant 0 : i32
      %c0_i32_77 = arith.constant 0 : i32
      %101 = tpu.memref_slice %arg3[%94, %c0_i32_77] : memref<32x32xf32, #tpu.memory_space<any>> -> memref<1x32xf32, #tpu.memory_space<any>>
      %c0_i32_78 = arith.constant 0 : i32
      %102 = tpu.memref_slice %arg9[%100, %c0_i32_78] : memref<16x32xf32, #tpu.memory_space<vmem>> -> memref<1x32xf32, #tpu.memory_space<vmem>>
      %103 = tpu.memref_slice %arg10[%c1_i32_75, %c0_i32_76] : memref<2x2x!tpu.dma_semaphore, #tpu.memory_space<semaphore_mem>> -> memref<1x1x!tpu.dma_semaphore, #tpu.memory_space<semaphore_mem>>
      %104 = tpu.memref_squeeze %103 : memref<1x1x!tpu.dma_semaphore, #tpu.memory_space<semaphore_mem>> -> memref<!tpu.dma_semaphore, #tpu.memory_space<semaphore_mem>>
      tpu.enqueue_dma source(%101 : memref<1x32xf32, #tpu.memory_space<any>>) target(%102 : memref<1x32xf32, #tpu.memory_space<vmem>>) target_semaphore(%104 : memref<!tpu.dma_semaphore, #tpu.memory_space<semaphore_mem>>)
      %c8_i32_79 = arith.constant 8 : i32
      %105 = arith.muli %32, %c8_i32_79 : i32
      %c4_i32 = arith.constant 4 : i32
      %106 = arith.addi %105, %c4_i32 : i32
      %c0_i32_80 = arith.constant 0 : i32
      %107 = arith.addi %c0_i32_80, %106 : i32
      %108 = arith.index_cast %107 : i32 to index
      %109 = memref.load %arg1[%108] : memref<16xi32, #tpu.memory_space<smem>>
      %c0_i32_81 = arith.constant 0 : i32
      %110 = arith.addi %c0_i32_81, %106 : i32
      %111 = arith.index_cast %110 : i32 to index
      %112 = memref.load %arg2[%111] : memref<16xi32, #tpu.memory_space<smem>>
      %c0_i32_82 = arith.constant 0 : i32
      %113 = arith.addi %c0_i32_82, %106 : i32
      %c0_i32_83 = arith.constant 0 : i32
      %c0_i32_84 = arith.constant 0 : i32
      %c0_i32_85 = arith.constant 0 : i32
      %114 = tpu.memref_slice %arg3[%109, %c0_i32_85] : memref<32x32xf32, #tpu.memory_space<any>> -> memref<1x32xf32, #tpu.memory_space<any>>
      %c0_i32_86 = arith.constant 0 : i32
      %115 = tpu.memref_slice %arg8[%113, %c0_i32_86] : memref<16x32xf32, #tpu.memory_space<vmem>> -> memref<1x32xf32, #tpu.memory_space<vmem>>
      %116 = tpu.memref_slice %arg10[%c0_i32_83, %c0_i32_84] : memref<2x2x!tpu.dma_semaphore, #tpu.memory_space<semaphore_mem>> -> memref<1x1x!tpu.dma_semaphore, #tpu.memory_space<semaphore_mem>>
      %117 = tpu.memref_squeeze %116 : memref<1x1x!tpu.dma_semaphore, #tpu.memory_space<semaphore_mem>> -> memref<!tpu.dma_semaphore, #tpu.memory_space<semaphore_mem>>
      tpu.enqueue_dma source(%114 : memref<1x32xf32, #tpu.memory_space<any>>) target(%115 : memref<1x32xf32, #tpu.memory_space<vmem>>) target_semaphore(%117 : memref<!tpu.dma_semaphore, #tpu.memory_space<semaphore_mem>>)
      %c0_i32_87 = arith.constant 0 : i32
      %118 = arith.addi %c0_i32_87, %106 : i32
      %c1_i32_88 = arith.constant 1 : i32
      %c0_i32_89 = arith.constant 0 : i32
      %c0_i32_90 = arith.constant 0 : i32
      %119 = tpu.memref_slice %arg3[%112, %c0_i32_90] : memref<32x32xf32, #tpu.memory_space<any>> -> memref<1x32xf32, #tpu.memory_space<any>>
      %c0_i32_91 = arith.constant 0 : i32
      %120 = tpu.memref_slice %arg9[%118, %c0_i32_91] : memref<16x32xf32, #tpu.memory_space<vmem>> -> memref<1x32xf32, #tpu.memory_space<vmem>>
      %121 = tpu.memref_slice %arg10[%c1_i32_88, %c0_i32_89] : memref<2x2x!tpu.dma_semaphore, #tpu.memory_space<semaphore_mem>> -> memref<1x1x!tpu.dma_semaphore, #tpu.memory_space<semaphore_mem>>
      %122 = tpu.memref_squeeze %121 : memref<1x1x!tpu.dma_semaphore, #tpu.memory_space<semaphore_mem>> -> memref<!tpu.dma_semaphore, #tpu.memory_space<semaphore_mem>>
      tpu.enqueue_dma source(%119 : memref<1x32xf32, #tpu.memory_space<any>>) target(%120 : memref<1x32xf32, #tpu.memory_space<vmem>>) target_semaphore(%122 : memref<!tpu.dma_semaphore, #tpu.memory_space<semaphore_mem>>)
      %c8_i32_92 = arith.constant 8 : i32
      %123 = arith.muli %32, %c8_i32_92 : i32
      %c5_i32 = arith.constant 5 : i32
      %124 = arith.addi %123, %c5_i32 : i32
      %c0_i32_93 = arith.constant 0 : i32
      %125 = arith.addi %c0_i32_93, %124 : i32
      %126 = arith.index_cast %125 : i32 to index
      %127 = memref.load %arg1[%126] : memref<16xi32, #tpu.memory_space<smem>>
      %c0_i32_94 = arith.constant 0 : i32
      %128 = arith.addi %c0_i32_94, %124 : i32
      %129 = arith.index_cast %128 : i32 to index
      %130 = memref.load %arg2[%129] : memref<16xi32, #tpu.memory_space<smem>>
      %c0_i32_95 = arith.constant 0 : i32
      %131 = arith.addi %c0_i32_95, %124 : i32
      %c0_i32_96 = arith.constant 0 : i32
      %c0_i32_97 = arith.constant 0 : i32
      %c0_i32_98 = arith.constant 0 : i32
      %132 = tpu.memref_slice %arg3[%127, %c0_i32_98] : memref<32x32xf32, #tpu.memory_space<any>> -> memref<1x32xf32, #tpu.memory_space<any>>
      %c0_i32_99 = arith.constant 0 : i32
      %133 = tpu.memref_slice %arg8[%131, %c0_i32_99] : memref<16x32xf32, #tpu.memory_space<vmem>> -> memref<1x32xf32, #tpu.memory_space<vmem>>
      %134 = tpu.memref_slice %arg10[%c0_i32_96, %c0_i32_97] : memref<2x2x!tpu.dma_semaphore, #tpu.memory_space<semaphore_mem>> -> memref<1x1x!tpu.dma_semaphore, #tpu.memory_space<semaphore_mem>>
      %135 = tpu.memref_squeeze %134 : memref<1x1x!tpu.dma_semaphore, #tpu.memory_space<semaphore_mem>> -> memref<!tpu.dma_semaphore, #tpu.memory_space<semaphore_mem>>
      tpu.enqueue_dma source(%132 : memref<1x32xf32, #tpu.memory_space<any>>) target(%133 : memref<1x32xf32, #tpu.memory_space<vmem>>) target_semaphore(%135 : memref<!tpu.dma_semaphore, #tpu.memory_space<semaphore_mem>>)
      %c0_i32_100 = arith.constant 0 : i32
      %136 = arith.addi %c0_i32_100, %124 : i32
      %c1_i32_101 = arith.constant 1 : i32
      %c0_i32_102 = arith.constant 0 : i32
      %c0_i32_103 = arith.constant 0 : i32
      %137 = tpu.memref_slice %arg3[%130, %c0_i32_103] : memref<32x32xf32, #tpu.memory_space<any>> -> memref<1x32xf32, #tpu.memory_space<any>>
      %c0_i32_104 = arith.constant 0 : i32
      %138 = tpu.memref_slice %arg9[%136, %c0_i32_104] : memref<16x32xf32, #tpu.memory_space<vmem>> -> memref<1x32xf32, #tpu.memory_space<vmem>>
      %139 = tpu.memref_slice %arg10[%c1_i32_101, %c0_i32_102] : memref<2x2x!tpu.dma_semaphore, #tpu.memory_space<semaphore_mem>> -> memref<1x1x!tpu.dma_semaphore, #tpu.memory_space<semaphore_mem>>
      %140 = tpu.memref_squeeze %139 : memref<1x1x!tpu.dma_semaphore, #tpu.memory_space<semaphore_mem>> -> memref<!tpu.dma_semaphore, #tpu.memory_space<semaphore_mem>>
      tpu.enqueue_dma source(%137 : memref<1x32xf32, #tpu.memory_space<any>>) target(%138 : memref<1x32xf32, #tpu.memory_space<vmem>>) target_semaphore(%140 : memref<!tpu.dma_semaphore, #tpu.memory_space<semaphore_mem>>)
      %c8_i32_105 = arith.constant 8 : i32
      %141 = arith.muli %32, %c8_i32_105 : i32
      %c6_i32 = arith.constant 6 : i32
      %142 = arith.addi %141, %c6_i32 : i32
      %c0_i32_106 = arith.constant 0 : i32
      %143 = arith.addi %c0_i32_106, %142 : i32
      %144 = arith.index_cast %143 : i32 to index
      %145 = memref.load %arg1[%144] : memref<16xi32, #tpu.memory_space<smem>>
      %c0_i32_107 = arith.constant 0 : i32
      %146 = arith.addi %c0_i32_107, %142 : i32
      %147 = arith.index_cast %146 : i32 to index
      %148 = memref.load %arg2[%147] : memref<16xi32, #tpu.memory_space<smem>>
      %c0_i32_108 = arith.constant 0 : i32
      %149 = arith.addi %c0_i32_108, %142 : i32
      %c0_i32_109 = arith.constant 0 : i32
      %c0_i32_110 = arith.constant 0 : i32
      %c0_i32_111 = arith.constant 0 : i32
      %150 = tpu.memref_slice %arg3[%145, %c0_i32_111] : memref<32x32xf32, #tpu.memory_space<any>> -> memref<1x32xf32, #tpu.memory_space<any>>
      %c0_i32_112 = arith.constant 0 : i32
      %151 = tpu.memref_slice %arg8[%149, %c0_i32_112] : memref<16x32xf32, #tpu.memory_space<vmem>> -> memref<1x32xf32, #tpu.memory_space<vmem>>
      %152 = tpu.memref_slice %arg10[%c0_i32_109, %c0_i32_110] : memref<2x2x!tpu.dma_semaphore, #tpu.memory_space<semaphore_mem>> -> memref<1x1x!tpu.dma_semaphore, #tpu.memory_space<semaphore_mem>>
      %153 = tpu.memref_squeeze %152 : memref<1x1x!tpu.dma_semaphore, #tpu.memory_space<semaphore_mem>> -> memref<!tpu.dma_semaphore, #tpu.memory_space<semaphore_mem>>
      tpu.enqueue_dma source(%150 : memref<1x32xf32, #tpu.memory_space<any>>) target(%151 : memref<1x32xf32, #tpu.memory_space<vmem>>) target_semaphore(%153 : memref<!tpu.dma_semaphore, #tpu.memory_space<semaphore_mem>>)
      %c0_i32_113 = arith.constant 0 : i32
      %154 = arith.addi %c0_i32_113, %142 : i32
      %c1_i32_114 = arith.constant 1 : i32
      %c0_i32_115 = arith.constant 0 : i32
      %c0_i32_116 = arith.constant 0 : i32
      %155 = tpu.memref_slice %arg3[%148, %c0_i32_116] : memref<32x32xf32, #tpu.memory_space<any>> -> memref<1x32xf32, #tpu.memory_space<any>>
      %c0_i32_117 = arith.constant 0 : i32
      %156 = tpu.memref_slice %arg9[%154, %c0_i32_117] : memref<16x32xf32, #tpu.memory_space<vmem>> -> memref<1x32xf32, #tpu.memory_space<vmem>>
      %157 = tpu.memref_slice %arg10[%c1_i32_114, %c0_i32_115] : memref<2x2x!tpu.dma_semaphore, #tpu.memory_space<semaphore_mem>> -> memref<1x1x!tpu.dma_semaphore, #tpu.memory_space<semaphore_mem>>
      %158 = tpu.memref_squeeze %157 : memref<1x1x!tpu.dma_semaphore, #tpu.memory_space<semaphore_mem>> -> memref<!tpu.dma_semaphore, #tpu.memory_space<semaphore_mem>>
      tpu.enqueue_dma source(%155 : memref<1x32xf32, #tpu.memory_space<any>>) target(%156 : memref<1x32xf32, #tpu.memory_space<vmem>>) target_semaphore(%158 : memref<!tpu.dma_semaphore, #tpu.memory_space<semaphore_mem>>)
      %c8_i32_118 = arith.constant 8 : i32
      %159 = arith.muli %32, %c8_i32_118 : i32
      %c7_i32 = arith.constant 7 : i32
      %160 = arith.addi %159, %c7_i32 : i32
      %c0_i32_119 = arith.constant 0 : i32
      %161 = arith.addi %c0_i32_119, %160 : i32
      %162 = arith.index_cast %161 : i32 to index
      %163 = memref.load %arg1[%162] : memref<16xi32, #tpu.memory_space<smem>>
      %c0_i32_120 = arith.constant 0 : i32
      %164 = arith.addi %c0_i32_120, %160 : i32
      %165 = arith.index_cast %164 : i32 to index
      %166 = memref.load %arg2[%165] : memref<16xi32, #tpu.memory_space<smem>>
      %c0_i32_121 = arith.constant 0 : i32
      %167 = arith.addi %c0_i32_121, %160 : i32
      %c0_i32_122 = arith.constant 0 : i32
      %c0_i32_123 = arith.constant 0 : i32
      %c0_i32_124 = arith.constant 0 : i32
      %168 = tpu.memref_slice %arg3[%163, %c0_i32_124] : memref<32x32xf32, #tpu.memory_space<any>> -> memref<1x32xf32, #tpu.memory_space<any>>
      %c0_i32_125 = arith.constant 0 : i32
      %169 = tpu.memref_slice %arg8[%167, %c0_i32_125] : memref<16x32xf32, #tpu.memory_space<vmem>> -> memref<1x32xf32, #tpu.memory_space<vmem>>
      %170 = tpu.memref_slice %arg10[%c0_i32_122, %c0_i32_123] : memref<2x2x!tpu.dma_semaphore, #tpu.memory_space<semaphore_mem>> -> memref<1x1x!tpu.dma_semaphore, #tpu.memory_space<semaphore_mem>>
      %171 = tpu.memref_squeeze %170 : memref<1x1x!tpu.dma_semaphore, #tpu.memory_space<semaphore_mem>> -> memref<!tpu.dma_semaphore, #tpu.memory_space<semaphore_mem>>
      tpu.enqueue_dma source(%168 : memref<1x32xf32, #tpu.memory_space<any>>) target(%169 : memref<1x32xf32, #tpu.memory_space<vmem>>) target_semaphore(%171 : memref<!tpu.dma_semaphore, #tpu.memory_space<semaphore_mem>>)
      %c0_i32_126 = arith.constant 0 : i32
      %172 = arith.addi %c0_i32_126, %160 : i32
      %c1_i32_127 = arith.constant 1 : i32
      %c0_i32_128 = arith.constant 0 : i32
      %c0_i32_129 = arith.constant 0 : i32
      %173 = tpu.memref_slice %arg3[%166, %c0_i32_129] : memref<32x32xf32, #tpu.memory_space<any>> -> memref<1x32xf32, #tpu.memory_space<any>>
      %c0_i32_130 = arith.constant 0 : i32
      %174 = tpu.memref_slice %arg9[%172, %c0_i32_130] : memref<16x32xf32, #tpu.memory_space<vmem>> -> memref<1x32xf32, #tpu.memory_space<vmem>>
      %175 = tpu.memref_slice %arg10[%c1_i32_127, %c0_i32_128] : memref<2x2x!tpu.dma_semaphore, #tpu.memory_space<semaphore_mem>> -> memref<1x1x!tpu.dma_semaphore, #tpu.memory_space<semaphore_mem>>
      %176 = tpu.memref_squeeze %175 : memref<1x1x!tpu.dma_semaphore, #tpu.memory_space<semaphore_mem>> -> memref<!tpu.dma_semaphore, #tpu.memory_space<semaphore_mem>>
      tpu.enqueue_dma source(%173 : memref<1x32xf32, #tpu.memory_space<any>>) target(%174 : memref<1x32xf32, #tpu.memory_space<vmem>>) target_semaphore(%176 : memref<!tpu.dma_semaphore, #tpu.memory_space<semaphore_mem>>)
      %c1_i32_131 = arith.constant 1 : i32
    } else {
    }
    %c1_i32_1 = arith.constant 1 : i32
    %4 = arith.addi %arg0, %c1_i32_1 : i32
    %c2_i32 = arith.constant 2 : i32
    %5 = arith.cmpi slt, %4, %c2_i32 : i32
    %6 = arith.extui %5 : i1 to i32
    %c0_i32_2 = arith.constant 0 : i32
    %7 = arith.cmpi ne, %6, %c0_i32_2 : i32
    scf.if %7 {
      %c1_i32_21 = arith.constant 1 : i32
      %31 = arith.addi %arg0, %c1_i32_21 : i32
      %c1_i32_22 = arith.constant 1 : i32
      %32 = arith.addi %arg0, %c1_i32_22 : i32
      %c1_i32_23 = arith.constant 1 : i32
      %33 = arith.andi %32, %c1_i32_23 : i32
      %c8_i32_24 = arith.constant 8 : i32
      %34 = arith.muli %31, %c8_i32_24 : i32
      %c8_i32_25 = arith.constant 8 : i32
      %35 = arith.muli %33, %c8_i32_25 : i32
      %c0_i32_26 = arith.constant 0 : i32
      %c1_i32_27 = arith.constant 1 : i32
      %36 = arith.muli %c0_i32_26, %c1_i32_27 : i32
      %c0_i32_28 = arith.constant 0 : i32
      %37 = arith.addi %c0_i32_28, %36 : i32
      %c8_i32_29 = arith.constant 8 : i32
      %38 = arith.muli %37, %c8_i32_29 : i32
      %c0_i32_30 = arith.constant 0 : i32
      %39 = arith.addi %38, %c0_i32_30 : i32
      %40 = arith.addi %34, %39 : i32
      %41 = arith.index_cast %40 : i32 to index
      %42 = memref.load %arg1[%41] : memref<16xi32, #tpu.memory_space<smem>>
      %43 = arith.addi %34, %39 : i32
      %44 = arith.index_cast %43 : i32 to index
      %45 = memref.load %arg2[%44] : memref<16xi32, #tpu.memory_space<smem>>
      %46 = arith.addi %35, %39 : i32
      %c0_i32_31 = arith.constant 0 : i32
      %c0_i32_32 = arith.constant 0 : i32
      %47 = tpu.memref_slice %arg3[%42, %c0_i32_32] : memref<32x32xf32, #tpu.memory_space<any>> -> memref<1x32xf32, #tpu.memory_space<any>>
      %c0_i32_33 = arith.constant 0 : i32
      %48 = tpu.memref_slice %arg8[%46, %c0_i32_33] : memref<16x32xf32, #tpu.memory_space<vmem>> -> memref<1x32xf32, #tpu.memory_space<vmem>>
      %49 = tpu.memref_slice %arg10[%c0_i32_31, %33] : memref<2x2x!tpu.dma_semaphore, #tpu.memory_space<semaphore_mem>> -> memref<1x1x!tpu.dma_semaphore, #tpu.memory_space<semaphore_mem>>
      %50 = tpu.memref_squeeze %49 : memref<1x1x!tpu.dma_semaphore, #tpu.memory_space<semaphore_mem>> -> memref<!tpu.dma_semaphore, #tpu.memory_space<semaphore_mem>>
      tpu.enqueue_dma source(%47 : memref<1x32xf32, #tpu.memory_space<any>>) target(%48 : memref<1x32xf32, #tpu.memory_space<vmem>>) target_semaphore(%50 : memref<!tpu.dma_semaphore, #tpu.memory_space<semaphore_mem>>)
      %51 = arith.addi %35, %39 : i32
      %c1_i32_34 = arith.constant 1 : i32
      %c0_i32_35 = arith.constant 0 : i32
      %52 = tpu.memref_slice %arg3[%45, %c0_i32_35] : memref<32x32xf32, #tpu.memory_space<any>> -> memref<1x32xf32, #tpu.memory_space<any>>
      %c0_i32_36 = arith.constant 0 : i32
      %53 = tpu.memref_slice %arg9[%51, %c0_i32_36] : memref<16x32xf32, #tpu.memory_space<vmem>> -> memref<1x32xf32, #tpu.memory_space<vmem>>
      %54 = tpu.memref_slice %arg10[%c1_i32_34, %33] : memref<2x2x!tpu.dma_semaphore, #tpu.memory_space<semaphore_mem>> -> memref<1x1x!tpu.dma_semaphore, #tpu.memory_space<semaphore_mem>>
      %55 = tpu.memref_squeeze %54 : memref<1x1x!tpu.dma_semaphore, #tpu.memory_space<semaphore_mem>> -> memref<!tpu.dma_semaphore, #tpu.memory_space<semaphore_mem>>
      tpu.enqueue_dma source(%52 : memref<1x32xf32, #tpu.memory_space<any>>) target(%53 : memref<1x32xf32, #tpu.memory_space<vmem>>) target_semaphore(%55 : memref<!tpu.dma_semaphore, #tpu.memory_space<semaphore_mem>>)
      %c8_i32_37 = arith.constant 8 : i32
      %56 = arith.muli %37, %c8_i32_37 : i32
      %c1_i32_38 = arith.constant 1 : i32
      %57 = arith.addi %56, %c1_i32_38 : i32
      %58 = arith.addi %34, %57 : i32
      %59 = arith.index_cast %58 : i32 to index
      %60 = memref.load %arg1[%59] : memref<16xi32, #tpu.memory_space<smem>>
      %61 = arith.addi %34, %57 : i32
      %62 = arith.index_cast %61 : i32 to index
      %63 = memref.load %arg2[%62] : memref<16xi32, #tpu.memory_space<smem>>
      %64 = arith.addi %35, %57 : i32
      %c0_i32_39 = arith.constant 0 : i32
      %c0_i32_40 = arith.constant 0 : i32
      %65 = tpu.memref_slice %arg3[%60, %c0_i32_40] : memref<32x32xf32, #tpu.memory_space<any>> -> memref<1x32xf32, #tpu.memory_space<any>>
      %c0_i32_41 = arith.constant 0 : i32
      %66 = tpu.memref_slice %arg8[%64, %c0_i32_41] : memref<16x32xf32, #tpu.memory_space<vmem>> -> memref<1x32xf32, #tpu.memory_space<vmem>>
      %67 = tpu.memref_slice %arg10[%c0_i32_39, %33] : memref<2x2x!tpu.dma_semaphore, #tpu.memory_space<semaphore_mem>> -> memref<1x1x!tpu.dma_semaphore, #tpu.memory_space<semaphore_mem>>
      %68 = tpu.memref_squeeze %67 : memref<1x1x!tpu.dma_semaphore, #tpu.memory_space<semaphore_mem>> -> memref<!tpu.dma_semaphore, #tpu.memory_space<semaphore_mem>>
      tpu.enqueue_dma source(%65 : memref<1x32xf32, #tpu.memory_space<any>>) target(%66 : memref<1x32xf32, #tpu.memory_space<vmem>>) target_semaphore(%68 : memref<!tpu.dma_semaphore, #tpu.memory_space<semaphore_mem>>)
      %69 = arith.addi %35, %57 : i32
      %c1_i32_42 = arith.constant 1 : i32
      %c0_i32_43 = arith.constant 0 : i32
      %70 = tpu.memref_slice %arg3[%63, %c0_i32_43] : memref<32x32xf32, #tpu.memory_space<any>> -> memref<1x32xf32, #tpu.memory_space<any>>
      %c0_i32_44 = arith.constant 0 : i32
      %71 = tpu.memref_slice %arg9[%69, %c0_i32_44] : memref<16x32xf32, #tpu.memory_space<vmem>> -> memref<1x32xf32, #tpu.memory_space<vmem>>
      %72 = tpu.memref_slice %arg10[%c1_i32_42, %33] : memref<2x2x!tpu.dma_semaphore, #tpu.memory_space<semaphore_mem>> -> memref<1x1x!tpu.dma_semaphore, #tpu.memory_space<semaphore_mem>>
      %73 = tpu.memref_squeeze %72 : memref<1x1x!tpu.dma_semaphore, #tpu.memory_space<semaphore_mem>> -> memref<!tpu.dma_semaphore, #tpu.memory_space<semaphore_mem>>
      tpu.enqueue_dma source(%70 : memref<1x32xf32, #tpu.memory_space<any>>) target(%71 : memref<1x32xf32, #tpu.memory_space<vmem>>) target_semaphore(%73 : memref<!tpu.dma_semaphore, #tpu.memory_space<semaphore_mem>>)
      %c8_i32_45 = arith.constant 8 : i32
      %74 = arith.muli %37, %c8_i32_45 : i32
      %c2_i32_46 = arith.constant 2 : i32
      %75 = arith.addi %74, %c2_i32_46 : i32
      %76 = arith.addi %34, %75 : i32
      %77 = arith.index_cast %76 : i32 to index
      %78 = memref.load %arg1[%77] : memref<16xi32, #tpu.memory_space<smem>>
      %79 = arith.addi %34, %75 : i32
      %80 = arith.index_cast %79 : i32 to index
      %81 = memref.load %arg2[%80] : memref<16xi32, #tpu.memory_space<smem>>
      %82 = arith.addi %35, %75 : i32
      %c0_i32_47 = arith.constant 0 : i32
      %c0_i32_48 = arith.constant 0 : i32
      %83 = tpu.memref_slice %arg3[%78, %c0_i32_48] : memref<32x32xf32, #tpu.memory_space<any>> -> memref<1x32xf32, #tpu.memory_space<any>>
      %c0_i32_49 = arith.constant 0 : i32
      %84 = tpu.memref_slice %arg8[%82, %c0_i32_49] : memref<16x32xf32, #tpu.memory_space<vmem>> -> memref<1x32xf32, #tpu.memory_space<vmem>>
      %85 = tpu.memref_slice %arg10[%c0_i32_47, %33] : memref<2x2x!tpu.dma_semaphore, #tpu.memory_space<semaphore_mem>> -> memref<1x1x!tpu.dma_semaphore, #tpu.memory_space<semaphore_mem>>
      %86 = tpu.memref_squeeze %85 : memref<1x1x!tpu.dma_semaphore, #tpu.memory_space<semaphore_mem>> -> memref<!tpu.dma_semaphore, #tpu.memory_space<semaphore_mem>>
      tpu.enqueue_dma source(%83 : memref<1x32xf32, #tpu.memory_space<any>>) target(%84 : memref<1x32xf32, #tpu.memory_space<vmem>>) target_semaphore(%86 : memref<!tpu.dma_semaphore, #tpu.memory_space<semaphore_mem>>)
      %87 = arith.addi %35, %75 : i32
      %c1_i32_50 = arith.constant 1 : i32
      %c0_i32_51 = arith.constant 0 : i32
      %88 = tpu.memref_slice %arg3[%81, %c0_i32_51] : memref<32x32xf32, #tpu.memory_space<any>> -> memref<1x32xf32, #tpu.memory_space<any>>
      %c0_i32_52 = arith.constant 0 : i32
      %89 = tpu.memref_slice %arg9[%87, %c0_i32_52] : memref<16x32xf32, #tpu.memory_space<vmem>> -> memref<1x32xf32, #tpu.memory_space<vmem>>
      %90 = tpu.memref_slice %arg10[%c1_i32_50, %33] : memref<2x2x!tpu.dma_semaphore, #tpu.memory_space<semaphore_mem>> -> memref<1x1x!tpu.dma_semaphore, #tpu.memory_space<semaphore_mem>>
      %91 = tpu.memref_squeeze %90 : memref<1x1x!tpu.dma_semaphore, #tpu.memory_space<semaphore_mem>> -> memref<!tpu.dma_semaphore, #tpu.memory_space<semaphore_mem>>
      tpu.enqueue_dma source(%88 : memref<1x32xf32, #tpu.memory_space<any>>) target(%89 : memref<1x32xf32, #tpu.memory_space<vmem>>) target_semaphore(%91 : memref<!tpu.dma_semaphore, #tpu.memory_space<semaphore_mem>>)
      %c8_i32_53 = arith.constant 8 : i32
      %92 = arith.muli %37, %c8_i32_53 : i32
      %c3_i32 = arith.constant 3 : i32
      %93 = arith.addi %92, %c3_i32 : i32
      %94 = arith.addi %34, %93 : i32
      %95 = arith.index_cast %94 : i32 to index
      %96 = memref.load %arg1[%95] : memref<16xi32, #tpu.memory_space<smem>>
      %97 = arith.addi %34, %93 : i32
      %98 = arith.index_cast %97 : i32 to index
      %99 = memref.load %arg2[%98] : memref<16xi32, #tpu.memory_space<smem>>
      %100 = arith.addi %35, %93 : i32
      %c0_i32_54 = arith.constant 0 : i32
      %c0_i32_55 = arith.constant 0 : i32
      %101 = tpu.memref_slice %arg3[%96, %c0_i32_55] : memref<32x32xf32, #tpu.memory_space<any>> -> memref<1x32xf32, #tpu.memory_space<any>>
      %c0_i32_56 = arith.constant 0 : i32
      %102 = tpu.memref_slice %arg8[%100, %c0_i32_56] : memref<16x32xf32, #tpu.memory_space<vmem>> -> memref<1x32xf32, #tpu.memory_space<vmem>>
      %103 = tpu.memref_slice %arg10[%c0_i32_54, %33] : memref<2x2x!tpu.dma_semaphore, #tpu.memory_space<semaphore_mem>> -> memref<1x1x!tpu.dma_semaphore, #tpu.memory_space<semaphore_mem>>
      %104 = tpu.memref_squeeze %103 : memref<1x1x!tpu.dma_semaphore, #tpu.memory_space<semaphore_mem>> -> memref<!tpu.dma_semaphore, #tpu.memory_space<semaphore_mem>>
      tpu.enqueue_dma source(%101 : memref<1x32xf32, #tpu.memory_space<any>>) target(%102 : memref<1x32xf32, #tpu.memory_space<vmem>>) target_semaphore(%104 : memref<!tpu.dma_semaphore, #tpu.memory_space<semaphore_mem>>)
      %105 = arith.addi %35, %93 : i32
      %c1_i32_57 = arith.constant 1 : i32
      %c0_i32_58 = arith.constant 0 : i32
      %106 = tpu.memref_slice %arg3[%99, %c0_i32_58] : memref<32x32xf32, #tpu.memory_space<any>> -> memref<1x32xf32, #tpu.memory_space<any>>
      %c0_i32_59 = arith.constant 0 : i32
      %107 = tpu.memref_slice %arg9[%105, %c0_i32_59] : memref<16x32xf32, #tpu.memory_space<vmem>> -> memref<1x32xf32, #tpu.memory_space<vmem>>
      %108 = tpu.memref_slice %arg10[%c1_i32_57, %33] : memref<2x2x!tpu.dma_semaphore, #tpu.memory_space<semaphore_mem>> -> memref<1x1x!tpu.dma_semaphore, #tpu.memory_space<semaphore_mem>>
      %109 = tpu.memref_squeeze %108 : memref<1x1x!tpu.dma_semaphore, #tpu.memory_space<semaphore_mem>> -> memref<!tpu.dma_semaphore, #tpu.memory_space<semaphore_mem>>
      tpu.enqueue_dma source(%106 : memref<1x32xf32, #tpu.memory_space<any>>) target(%107 : memref<1x32xf32, #tpu.memory_space<vmem>>) target_semaphore(%109 : memref<!tpu.dma_semaphore, #tpu.memory_space<semaphore_mem>>)
      %c8_i32_60 = arith.constant 8 : i32
      %110 = arith.muli %37, %c8_i32_60 : i32
      %c4_i32 = arith.constant 4 : i32
      %111 = arith.addi %110, %c4_i32 : i32
      %112 = arith.addi %34, %111 : i32
      %113 = arith.index_cast %112 : i32 to index
      %114 = memref.load %arg1[%113] : memref<16xi32, #tpu.memory_space<smem>>
      %115 = arith.addi %34, %111 : i32
      %116 = arith.index_cast %115 : i32 to index
      %117 = memref.load %arg2[%116] : memref<16xi32, #tpu.memory_space<smem>>
      %118 = arith.addi %35, %111 : i32
      %c0_i32_61 = arith.constant 0 : i32
      %c0_i32_62 = arith.constant 0 : i32
      %119 = tpu.memref_slice %arg3[%114, %c0_i32_62] : memref<32x32xf32, #tpu.memory_space<any>> -> memref<1x32xf32, #tpu.memory_space<any>>
      %c0_i32_63 = arith.constant 0 : i32
      %120 = tpu.memref_slice %arg8[%118, %c0_i32_63] : memref<16x32xf32, #tpu.memory_space<vmem>> -> memref<1x32xf32, #tpu.memory_space<vmem>>
      %121 = tpu.memref_slice %arg10[%c0_i32_61, %33] : memref<2x2x!tpu.dma_semaphore, #tpu.memory_space<semaphore_mem>> -> memref<1x1x!tpu.dma_semaphore, #tpu.memory_space<semaphore_mem>>
      %122 = tpu.memref_squeeze %121 : memref<1x1x!tpu.dma_semaphore, #tpu.memory_space<semaphore_mem>> -> memref<!tpu.dma_semaphore, #tpu.memory_space<semaphore_mem>>
      tpu.enqueue_dma source(%119 : memref<1x32xf32, #tpu.memory_space<any>>) target(%120 : memref<1x32xf32, #tpu.memory_space<vmem>>) target_semaphore(%122 : memref<!tpu.dma_semaphore, #tpu.memory_space<semaphore_mem>>)
      %123 = arith.addi %35, %111 : i32
      %c1_i32_64 = arith.constant 1 : i32
      %c0_i32_65 = arith.constant 0 : i32
      %124 = tpu.memref_slice %arg3[%117, %c0_i32_65] : memref<32x32xf32, #tpu.memory_space<any>> -> memref<1x32xf32, #tpu.memory_space<any>>
      %c0_i32_66 = arith.constant 0 : i32
      %125 = tpu.memref_slice %arg9[%123, %c0_i32_66] : memref<16x32xf32, #tpu.memory_space<vmem>> -> memref<1x32xf32, #tpu.memory_space<vmem>>
      %126 = tpu.memref_slice %arg10[%c1_i32_64, %33] : memref<2x2x!tpu.dma_semaphore, #tpu.memory_space<semaphore_mem>> -> memref<1x1x!tpu.dma_semaphore, #tpu.memory_space<semaphore_mem>>
      %127 = tpu.memref_squeeze %126 : memref<1x1x!tpu.dma_semaphore, #tpu.memory_space<semaphore_mem>> -> memref<!tpu.dma_semaphore, #tpu.memory_space<semaphore_mem>>
      tpu.enqueue_dma source(%124 : memref<1x32xf32, #tpu.memory_space<any>>) target(%125 : memref<1x32xf32, #tpu.memory_space<vmem>>) target_semaphore(%127 : memref<!tpu.dma_semaphore, #tpu.memory_space<semaphore_mem>>)
      %c8_i32_67 = arith.constant 8 : i32
      %128 = arith.muli %37, %c8_i32_67 : i32
      %c5_i32 = arith.constant 5 : i32
      %129 = arith.addi %128, %c5_i32 : i32
      %130 = arith.addi %34, %129 : i32
      %131 = arith.index_cast %130 : i32 to index
      %132 = memref.load %arg1[%131] : memref<16xi32, #tpu.memory_space<smem>>
      %133 = arith.addi %34, %129 : i32
      %134 = arith.index_cast %133 : i32 to index
      %135 = memref.load %arg2[%134] : memref<16xi32, #tpu.memory_space<smem>>
      %136 = arith.addi %35, %129 : i32
      %c0_i32_68 = arith.constant 0 : i32
      %c0_i32_69 = arith.constant 0 : i32
      %137 = tpu.memref_slice %arg3[%132, %c0_i32_69] : memref<32x32xf32, #tpu.memory_space<any>> -> memref<1x32xf32, #tpu.memory_space<any>>
      %c0_i32_70 = arith.constant 0 : i32
      %138 = tpu.memref_slice %arg8[%136, %c0_i32_70] : memref<16x32xf32, #tpu.memory_space<vmem>> -> memref<1x32xf32, #tpu.memory_space<vmem>>
      %139 = tpu.memref_slice %arg10[%c0_i32_68, %33] : memref<2x2x!tpu.dma_semaphore, #tpu.memory_space<semaphore_mem>> -> memref<1x1x!tpu.dma_semaphore, #tpu.memory_space<semaphore_mem>>
      %140 = tpu.memref_squeeze %139 : memref<1x1x!tpu.dma_semaphore, #tpu.memory_space<semaphore_mem>> -> memref<!tpu.dma_semaphore, #tpu.memory_space<semaphore_mem>>
      tpu.enqueue_dma source(%137 : memref<1x32xf32, #tpu.memory_space<any>>) target(%138 : memref<1x32xf32, #tpu.memory_space<vmem>>) target_semaphore(%140 : memref<!tpu.dma_semaphore, #tpu.memory_space<semaphore_mem>>)
      %141 = arith.addi %35, %129 : i32
      %c1_i32_71 = arith.constant 1 : i32
      %c0_i32_72 = arith.constant 0 : i32
      %142 = tpu.memref_slice %arg3[%135, %c0_i32_72] : memref<32x32xf32, #tpu.memory_space<any>> -> memref<1x32xf32, #tpu.memory_space<any>>
      %c0_i32_73 = arith.constant 0 : i32
      %143 = tpu.memref_slice %arg9[%141, %c0_i32_73] : memref<16x32xf32, #tpu.memory_space<vmem>> -> memref<1x32xf32, #tpu.memory_space<vmem>>
      %144 = tpu.memref_slice %arg10[%c1_i32_71, %33] : memref<2x2x!tpu.dma_semaphore, #tpu.memory_space<semaphore_mem>> -> memref<1x1x!tpu.dma_semaphore, #tpu.memory_space<semaphore_mem>>
      %145 = tpu.memref_squeeze %144 : memref<1x1x!tpu.dma_semaphore, #tpu.memory_space<semaphore_mem>> -> memref<!tpu.dma_semaphore, #tpu.memory_space<semaphore_mem>>
      tpu.enqueue_dma source(%142 : memref<1x32xf32, #tpu.memory_space<any>>) target(%143 : memref<1x32xf32, #tpu.memory_space<vmem>>) target_semaphore(%145 : memref<!tpu.dma_semaphore, #tpu.memory_space<semaphore_mem>>)
      %c8_i32_74 = arith.constant 8 : i32
      %146 = arith.muli %37, %c8_i32_74 : i32
      %c6_i32 = arith.constant 6 : i32
      %147 = arith.addi %146, %c6_i32 : i32
      %148 = arith.addi %34, %147 : i32
      %149 = arith.index_cast %148 : i32 to index
      %150 = memref.load %arg1[%149] : memref<16xi32, #tpu.memory_space<smem>>
      %151 = arith.addi %34, %147 : i32
      %152 = arith.index_cast %151 : i32 to index
      %153 = memref.load %arg2[%152] : memref<16xi32, #tpu.memory_space<smem>>
      %154 = arith.addi %35, %147 : i32
      %c0_i32_75 = arith.constant 0 : i32
      %c0_i32_76 = arith.constant 0 : i32
      %155 = tpu.memref_slice %arg3[%150, %c0_i32_76] : memref<32x32xf32, #tpu.memory_space<any>> -> memref<1x32xf32, #tpu.memory_space<any>>
      %c0_i32_77 = arith.constant 0 : i32
      %156 = tpu.memref_slice %arg8[%154, %c0_i32_77] : memref<16x32xf32, #tpu.memory_space<vmem>> -> memref<1x32xf32, #tpu.memory_space<vmem>>
      %157 = tpu.memref_slice %arg10[%c0_i32_75, %33] : memref<2x2x!tpu.dma_semaphore, #tpu.memory_space<semaphore_mem>> -> memref<1x1x!tpu.dma_semaphore, #tpu.memory_space<semaphore_mem>>
      %158 = tpu.memref_squeeze %157 : memref<1x1x!tpu.dma_semaphore, #tpu.memory_space<semaphore_mem>> -> memref<!tpu.dma_semaphore, #tpu.memory_space<semaphore_mem>>
      tpu.enqueue_dma source(%155 : memref<1x32xf32, #tpu.memory_space<any>>) target(%156 : memref<1x32xf32, #tpu.memory_space<vmem>>) target_semaphore(%158 : memref<!tpu.dma_semaphore, #tpu.memory_space<semaphore_mem>>)
      %159 = arith.addi %35, %147 : i32
      %c1_i32_78 = arith.constant 1 : i32
      %c0_i32_79 = arith.constant 0 : i32
      %160 = tpu.memref_slice %arg3[%153, %c0_i32_79] : memref<32x32xf32, #tpu.memory_space<any>> -> memref<1x32xf32, #tpu.memory_space<any>>
      %c0_i32_80 = arith.constant 0 : i32
      %161 = tpu.memref_slice %arg9[%159, %c0_i32_80] : memref<16x32xf32, #tpu.memory_space<vmem>> -> memref<1x32xf32, #tpu.memory_space<vmem>>
      %162 = tpu.memref_slice %arg10[%c1_i32_78, %33] : memref<2x2x!tpu.dma_semaphore, #tpu.memory_space<semaphore_mem>> -> memref<1x1x!tpu.dma_semaphore, #tpu.memory_space<semaphore_mem>>
      %163 = tpu.memref_squeeze %162 : memref<1x1x!tpu.dma_semaphore, #tpu.memory_space<semaphore_mem>> -> memref<!tpu.dma_semaphore, #tpu.memory_space<semaphore_mem>>
      tpu.enqueue_dma source(%160 : memref<1x32xf32, #tpu.memory_space<any>>) target(%161 : memref<1x32xf32, #tpu.memory_space<vmem>>) target_semaphore(%163 : memref<!tpu.dma_semaphore, #tpu.memory_space<semaphore_mem>>)
      %c8_i32_81 = arith.constant 8 : i32
      %164 = arith.muli %37, %c8_i32_81 : i32
      %c7_i32 = arith.constant 7 : i32
      %165 = arith.addi %164, %c7_i32 : i32
      %166 = arith.addi %34, %165 : i32
      %167 = arith.index_cast %166 : i32 to index
      %168 = memref.load %arg1[%167] : memref<16xi32, #tpu.memory_space<smem>>
      %169 = arith.addi %34, %165 : i32
      %170 = arith.index_cast %169 : i32 to index
      %171 = memref.load %arg2[%170] : memref<16xi32, #tpu.memory_space<smem>>
      %172 = arith.addi %35, %165 : i32
      %c0_i32_82 = arith.constant 0 : i32
      %c0_i32_83 = arith.constant 0 : i32
      %173 = tpu.memref_slice %arg3[%168, %c0_i32_83] : memref<32x32xf32, #tpu.memory_space<any>> -> memref<1x32xf32, #tpu.memory_space<any>>
      %c0_i32_84 = arith.constant 0 : i32
      %174 = tpu.memref_slice %arg8[%172, %c0_i32_84] : memref<16x32xf32, #tpu.memory_space<vmem>> -> memref<1x32xf32, #tpu.memory_space<vmem>>
      %175 = tpu.memref_slice %arg10[%c0_i32_82, %33] : memref<2x2x!tpu.dma_semaphore, #tpu.memory_space<semaphore_mem>> -> memref<1x1x!tpu.dma_semaphore, #tpu.memory_space<semaphore_mem>>
      %176 = tpu.memref_squeeze %175 : memref<1x1x!tpu.dma_semaphore, #tpu.memory_space<semaphore_mem>> -> memref<!tpu.dma_semaphore, #tpu.memory_space<semaphore_mem>>
      tpu.enqueue_dma source(%173 : memref<1x32xf32, #tpu.memory_space<any>>) target(%174 : memref<1x32xf32, #tpu.memory_space<vmem>>) target_semaphore(%176 : memref<!tpu.dma_semaphore, #tpu.memory_space<semaphore_mem>>)
      %177 = arith.addi %35, %165 : i32
      %c1_i32_85 = arith.constant 1 : i32
      %c0_i32_86 = arith.constant 0 : i32
      %178 = tpu.memref_slice %arg3[%171, %c0_i32_86] : memref<32x32xf32, #tpu.memory_space<any>> -> memref<1x32xf32, #tpu.memory_space<any>>
      %c0_i32_87 = arith.constant 0 : i32
      %179 = tpu.memref_slice %arg9[%177, %c0_i32_87] : memref<16x32xf32, #tpu.memory_space<vmem>> -> memref<1x32xf32, #tpu.memory_space<vmem>>
      %180 = tpu.memref_slice %arg10[%c1_i32_85, %33] : memref<2x2x!tpu.dma_semaphore, #tpu.memory_space<semaphore_mem>> -> memref<1x1x!tpu.dma_semaphore, #tpu.memory_space<semaphore_mem>>
      %181 = tpu.memref_squeeze %180 : memref<1x1x!tpu.dma_semaphore, #tpu.memory_space<semaphore_mem>> -> memref<!tpu.dma_semaphore, #tpu.memory_space<semaphore_mem>>
      tpu.enqueue_dma source(%178 : memref<1x32xf32, #tpu.memory_space<any>>) target(%179 : memref<1x32xf32, #tpu.memory_space<vmem>>) target_semaphore(%181 : memref<!tpu.dma_semaphore, #tpu.memory_space<semaphore_mem>>)
      %c1_i32_88 = arith.constant 1 : i32
    } else {
    }
    %c8_i32 = arith.constant 8 : i32
    %8 = arith.muli %0, %c8_i32 : i32
    %9 = tpu.assume_multiple %8, 8 : i32
    %c0_i32_3 = arith.constant 0 : i32
    %c0_i32_4 = arith.constant 0 : i32
    %c0_i32_5 = arith.constant 0 : i32
    %10 = tpu.memref_slice %arg3[%c0_i32_4, %c0_i32_5] : memref<32x32xf32, #tpu.memory_space<any>> -> memref<8x32xf32, #tpu.memory_space<any>>
    %c0_i32_6 = arith.constant 0 : i32
    %11 = tpu.memref_slice %arg8[%9, %c0_i32_6] : memref<16x32xf32, #tpu.memory_space<vmem>> -> memref<8x32xf32, #tpu.memory_space<vmem>>
    %12 = tpu.memref_slice %arg10[%c0_i32_3, %0] : memref<2x2x!tpu.dma_semaphore, #tpu.memory_space<semaphore_mem>> -> memref<1x1x!tpu.dma_semaphore, #tpu.memory_space<semaphore_mem>>
    %13 = tpu.memref_squeeze %12 : memref<1x1x!tpu.dma_semaphore, #tpu.memory_space<semaphore_mem>> -> memref<!tpu.dma_semaphore, #tpu.memory_space<semaphore_mem>>
    tpu.wait_dma2 semaphore(%13 : memref<!tpu.dma_semaphore, #tpu.memory_space<semaphore_mem>>) src(%10 : memref<8x32xf32, #tpu.memory_space<any>>) dst(%11 : memref<8x32xf32, #tpu.memory_space<vmem>>)
    %c1_i32_7 = arith.constant 1 : i32
    %c0_i32_8 = arith.constant 0 : i32
    %c0_i32_9 = arith.constant 0 : i32
    %14 = tpu.memref_slice %arg3[%c0_i32_8, %c0_i32_9] : memref<32x32xf32, #tpu.memory_space<any>> -> memref<8x32xf32, #tpu.memory_space<any>>
    %c0_i32_10 = arith.constant 0 : i32
    %15 = tpu.memref_slice %arg9[%9, %c0_i32_10] : memref<16x32xf32, #tpu.memory_space<vmem>> -> memref<8x32xf32, #tpu.memory_space<vmem>>
    %16 = tpu.memref_slice %arg10[%c1_i32_7, %0] : memref<2x2x!tpu.dma_semaphore, #tpu.memory_space<semaphore_mem>> -> memref<1x1x!tpu.dma_semaphore, #tpu.memory_space<semaphore_mem>>
    %17 = tpu.memref_squeeze %16 : memref<1x1x!tpu.dma_semaphore, #tpu.memory_space<semaphore_mem>> -> memref<!tpu.dma_semaphore, #tpu.memory_space<semaphore_mem>>
    tpu.wait_dma2 semaphore(%17 : memref<!tpu.dma_semaphore, #tpu.memory_space<semaphore_mem>>) src(%14 : memref<8x32xf32, #tpu.memory_space<any>>) dst(%15 : memref<8x32xf32, #tpu.memory_space<vmem>>)
    %18 = arith.index_cast %9 : i32 to index
    %c0 = arith.constant 0 : index
    %19 = vector.load %arg8[%18, %c0] : memref<16x32xf32, #tpu.memory_space<vmem>>, vector<8x32xf32>
    %20 = arith.index_cast %9 : i32 to index
    %c0_11 = arith.constant 0 : index
    %21 = vector.load %arg9[%20, %c0_11] : memref<16x32xf32, #tpu.memory_space<vmem>>, vector<8x32xf32>
    %c0_12 = arith.constant 0 : index
    %c0_13 = arith.constant 0 : index
    %22 = vector.load %arg4[%c0_12, %c0_13] : memref<32x128xf32, #tpu.memory_space<vmem>>, vector<32x128xf32>
    %cst = arith.constant dense<0.000000e+00> : vector<8x128xf32>
    %23 = tpu.matmul %19, %22, %cst {dimension_numbers = #tpu.dot_dimension_numbers<[1], [0], [0], [1], [0, 0, 1, 1], [], []>} : vector<8x32xf32>, vector<32x128xf32>, vector<8x128xf32> -> vector<8x128xf32>
    %c0_14 = arith.constant 0 : index
    %c0_15 = arith.constant 0 : index
    %24 = vector.load %arg5[%c0_14, %c0_15] : memref<32x128xf32, #tpu.memory_space<vmem>>, vector<32x128xf32>
    %cst_16 = arith.constant dense<0.000000e+00> : vector<8x128xf32>
    %25 = tpu.matmul %21, %24, %cst_16 {dimension_numbers = #tpu.dot_dimension_numbers<[1], [0], [0], [1], [0, 0, 1, 1], [], []>} : vector<8x32xf32>, vector<32x128xf32>, vector<8x128xf32> -> vector<8x128xf32>
    %26 = arith.addf %23, %25 : vector<8x128xf32>
    %c0_17 = arith.constant 0 : index
    %c0_18 = arith.constant 0 : index
    %27 = vector.load %arg6[%c0_17, %c0_18] : memref<1x128xf32, #tpu.memory_space<vmem>>, vector<1x128xf32>
    %28 = vector.broadcast %27 : vector<1x128xf32> to vector<8x128xf32>
    %29 = arith.addf %26, %28 : vector<8x128xf32>
    %c0_19 = arith.constant 0 : index
    %c0_20 = arith.constant 0 : index
    %30 = vector.load %arg7[%c0_19, %c0_20] : memref<8x128xf32, #tpu.memory_space<vmem>>, vector<8x128xf32>
    tpu.vector_store %arg7[%c0_19, %c0_20], %29 {strides = array<i32>} : memref<8x128xf32, #tpu.memory_space<vmem>>, vector<8x128xf32>,
    return
  }
  func.func @transform_1(%arg0: i32, %arg1: memref<16xi32, #tpu.memory_space<smem>>, %arg2: memref<16xi32, #tpu.memory_space<smem>>) -> (i32, i32) {
    %c0_i32 = arith.constant 0 : i32
    %c0_i32_0 = arith.constant 0 : i32
    %c0_i32_1 = arith.constant 0 : i32
    return %c0_i32, %c0_i32_0 : i32, i32
  }
  func.func @transform_2(%arg0: i32, %arg1: memref<16xi32, #tpu.memory_space<smem>>, %arg2: memref<16xi32, #tpu.memory_space<smem>>) -> (i32, i32) {
    %c0_i32 = arith.constant 0 : i32
    %c0_i32_0 = arith.constant 0 : i32
    %c0_i32_1 = arith.constant 0 : i32
    return %c0_i32, %c0_i32_0 : i32, i32
  }
  func.func @transform_3(%arg0: i32, %arg1: memref<16xi32, #tpu.memory_space<smem>>, %arg2: memref<16xi32, #tpu.memory_space<smem>>) -> (i32, i32) {
    %c0_i32 = arith.constant 0 : i32
    %c0_i32_0 = arith.constant 0 : i32
    %c0_i32_1 = arith.constant 0 : i32
    return %c0_i32, %c0_i32_0 : i32, i32
  }
  func.func @transform_4(%arg0: i32, %arg1: memref<16xi32, #tpu.memory_space<smem>>, %arg2: memref<16xi32, #tpu.memory_space<smem>>) -> (i32, i32) {
    %c0_i32 = arith.constant 0 : i32
    %c0_i32_0 = arith.constant 0 : i32
    return %arg0, %c0_i32 : i32, i32
  }
}

</mosaic_0001>

<llo_original>
// kernel: tpu_custom_call.1
$region0: #{tpu_custom_call.1}
  #allocation0 [shape = 'u32[]', space=smem, size = 0x4, offset = 0x4, fixed_abs, tag = 'smem constant byte address 0x4 - core index']
  #allocation1 [shape = 'u32[144,128]{1,0:T(1,128)}', space=vmem, size = 0x12000, scoped, tag = 'internal scratch']
  #allocation2 [shape = 'f32[16,32]{1,0:T(8,128)}', space=vmem, size = 0x2000, scoped, tag = 'scratch operand']
  #allocation3 [shape = 'f32[16,32]{1,0:T(8,128)}', space=vmem, size = 0x2000, scoped, tag = 'scratch operand']
  #allocation4 [shape = 's32[4]{0}', space=sflag, size = 0x10, scoped, tag = 'scratch operand']
  #allocation5 [shape = 's32[1]{0}', space=sflag, size = 0x4, scoped, tag = 'scoped memory for tpu_custom_call.1']
  #allocation6 [shape = 'u8[512]{0}', space=smem, size = 0x200, scoped, tag = 'prefetched SMEM operand 0']
  #allocation7 [shape = 'u8[512]{0}', space=smem, size = 0x200, scoped, tag = 'prefetched SMEM operand 1']
  #allocation14 [shape = 's32[]', space=sflag, size = 0x4, offset = 0, fixed_abs, tag = 'sflag constant byte address 0x0 - dummy sync flag']
  #allocation15 [shape = 's32[]', space=sflag, size = 0x4, offset = 0, fixed_abs, tag = 'sflag constant byte address 0x0 - dummy sync flag']
  #allocation16 [shape = 'u32[]', space=smem, size = 0x4, offset = 0x44, fixed_abs, tag = 'smem constant byte address 0x44 - assertion arg 0']
  #allocation17 [shape = 'u32[]', space=smem, size = 0x4, offset = 0x48, fixed_abs, tag = 'smem constant byte address 0x48 - assertion arg 1']
  #allocation18 [shape = 's32[]', space=sflag, size = 0x4, offset = 0, fixed_abs, tag = 'sflag constant byte address 0x0 - dummy sync flag']
  #allocation19 [shape = 's32[]', space=sflag, size = 0x4, offset = 0, fixed_abs, tag = 'sflag constant byte address 0x0 - dummy sync flag']
  #allocation20 [shape = 's32[]', space=sflag, size = 0x4, offset = 0, fixed_abs, tag = 'sflag constant byte address 0x0 - dummy sync flag']
  #allocation21 [shape = 's32[]', space=sflag, size = 0x4, offset = 0, fixed_abs, tag = 'sflag constant byte address 0x0 - dummy sync flag']
  #allocation22 [shape = 's32[]', space=sflag, size = 0x4, offset = 0, fixed_abs, tag = 'sflag constant byte address 0x0 - dummy sync flag']
  #allocation23 [shape = 's32[]', space=sflag, size = 0x4, offset = 0, fixed_abs, tag = 'sflag constant byte address 0x0 - dummy sync flag']
  #allocation24 [shape = 's32[]', space=sflag, size = 0x4, offset = 0, fixed_abs, tag = 'sflag constant byte address 0x0 - dummy sync flag']
  #allocation25 [shape = 's32[]', space=sflag, size = 0x4, offset = 0, fixed_abs, tag = 'sflag constant byte address 0x0 - dummy sync flag']
  #allocation26 [shape = 's32[]', space=sflag, size = 0x4, offset = 0, fixed_abs, tag = 'sflag constant byte address 0x0 - dummy sync flag']
  #allocation27 [shape = 's32[]', space=sflag, size = 0x4, offset = 0, fixed_abs, tag = 'sflag constant byte address 0x0 - dummy sync flag']
  #allocation28 [shape = 's32[]', space=sflag, size = 0x4, offset = 0, fixed_abs, tag = 'sflag constant byte address 0x0 - dummy sync flag']
  #allocation29 [shape = 's32[]', space=sflag, size = 0x4, offset = 0, fixed_abs, tag = 'sflag constant byte address 0x0 - dummy sync flag']
  #allocation30 [shape = 's32[]', space=sflag, size = 0x4, offset = 0, fixed_abs, tag = 'sflag constant byte address 0x0 - dummy sync flag']
  #allocation31 [shape = 's32[]', space=sflag, size = 0x4, offset = 0, fixed_abs, tag = 'sflag constant byte address 0x0 - dummy sync flag']
  #allocation32 [shape = 's32[]', space=sflag, size = 0x4, offset = 0, fixed_abs, tag = 'sflag constant byte address 0x0 - dummy sync flag']
  #allocation33 [shape = 's32[]', space=sflag, size = 0x4, offset = 0, fixed_abs, tag = 'sflag constant byte address 0x0 - dummy sync flag']
  #allocation34 [shape = 's32[]', space=sflag, size = 0x4, offset = 0, fixed_abs, tag = 'sflag constant byte address 0x0 - dummy sync flag']
  #allocation35 [shape = 's32[]', space=sflag, size = 0x4, offset = 0, fixed_abs, tag = 'sflag constant byte address 0x0 - dummy sync flag']
  #allocation36 [shape = 's32[]', space=sflag, size = 0x4, offset = 0, fixed_abs, tag = 'sflag constant byte address 0x0 - dummy sync flag']
  #allocation37 [shape = 's32[]', space=sflag, size = 0x4, offset = 0, fixed_abs, tag = 'sflag constant byte address 0x0 - dummy sync flag']
  #allocation38 [shape = 's32[]', space=sflag, size = 0x4, offset = 0, fixed_abs, tag = 'sflag constant byte address 0x0 - dummy sync flag']
  #allocation39 [shape = 's32[]', space=sflag, size = 0x4, offset = 0, fixed_abs, tag = 'sflag constant byte address 0x0 - dummy sync flag']
  #allocation40 [shape = 's32[]', space=sflag, size = 0x4, offset = 0, fixed_abs, tag = 'sflag constant byte address 0x0 - dummy sync flag']
  #allocation41 [shape = 's32[]', space=sflag, size = 0x4, offset = 0, fixed_abs, tag = 'sflag constant byte address 0x0 - dummy sync flag']
  #allocation42 [shape = 's32[]', space=sflag, size = 0x4, offset = 0, fixed_abs, tag = 'sflag constant byte address 0x0 - dummy sync flag']
  #allocation43 [shape = 's32[]', space=sflag, size = 0x4, offset = 0, fixed_abs, tag = 'sflag constant byte address 0x0 - dummy sync flag']
  #allocation44 [shape = 's32[]', space=sflag, size = 0x4, offset = 0, fixed_abs, tag = 'sflag constant byte address 0x0 - dummy sync flag']
  #allocation45 [shape = 's32[]', space=sflag, size = 0x4, offset = 0, fixed_abs, tag = 'sflag constant byte address 0x0 - dummy sync flag']
  #allocation46 [shape = 's32[]', space=sflag, size = 0x4, offset = 0, fixed_abs, tag = 'sflag constant byte address 0x0 - dummy sync flag']
  #allocation47 [shape = 's32[]', space=sflag, size = 0x4, offset = 0, fixed_abs, tag = 'sflag constant byte address 0x0 - dummy sync flag']
  #allocation48 [shape = 's32[]', space=sflag, size = 0x4, offset = 0, fixed_abs, tag = 'sflag constant byte address 0x0 - dummy sync flag']
  #allocation49 [shape = 's32[]', space=sflag, size = 0x4, offset = 0, fixed_abs, tag = 'sflag constant byte address 0x0 - dummy sync flag']
  #allocation50 [shape = 's32[]', space=sflag, size = 0x4, offset = 0, fixed_abs, tag = 'sflag constant byte address 0x0 - dummy sync flag']
  #allocation51 [shape = 's32[]', space=sflag, size = 0x4, offset = 0, fixed_abs, tag = 'sflag constant byte address 0x0 - dummy sync flag']
  #allocation52 [shape = 's32[]', space=sflag, size = 0x4, offset = 0, fixed_abs, tag = 'sflag constant byte address 0x0 - dummy sync flag']
  #allocation53 [shape = 's32[]', space=sflag, size = 0x4, offset = 0, fixed_abs, tag = 'sflag constant byte address 0x0 - dummy sync flag']
  #allocation54 [shape = 's32[]', space=sflag, size = 0x4, offset = 0, fixed_abs, tag = 'sflag constant byte address 0x0 - dummy sync flag']
  #allocation55 [shape = 's32[]', space=sflag, size = 0x4, offset = 0, fixed_abs, tag = 'sflag constant byte address 0x0 - dummy sync flag']
  #allocation56 [shape = 's32[]', space=sflag, size = 0x4, offset = 0, fixed_abs, tag = 'sflag constant byte address 0x0 - dummy sync flag']
  #allocation57 [shape = 's32[]', space=sflag, size = 0x4, offset = 0, fixed_abs, tag = 'sflag constant byte address 0x0 - dummy sync flag']
  #allocation58 [shape = 's32[]', space=sflag, size = 0x4, offset = 0, fixed_abs, tag = 'sflag constant byte address 0x0 - dummy sync flag']
  #allocation59 [shape = 's32[]', space=sflag, size = 0x4, offset = 0, fixed_abs, tag = 'sflag constant byte address 0x0 - dummy sync flag']
  #allocation60 [shape = 's32[]', space=sflag, size = 0x4, offset = 0, fixed_abs, tag = 'sflag constant byte address 0x0 - dummy sync flag']
  #allocation61 [shape = 's32[]', space=sflag, size = 0x4, offset = 0, fixed_abs, tag = 'sflag constant byte address 0x0 - dummy sync flag']
  #allocation62 [shape = 's32[]', space=sflag, size = 0x4, offset = 0, fixed_abs, tag = 'sflag constant byte address 0x0 - dummy sync flag']
  #allocation63 [shape = 's32[]', space=sflag, size = 0x4, offset = 0, fixed_abs, tag = 'sflag constant byte address 0x0 - dummy sync flag']
  #allocation64 [shape = 's32[]', space=sflag, size = 0x4, offset = 0, fixed_abs, tag = 'sflag constant byte address 0x0 - dummy sync flag']
  #allocation65 [shape = 's32[]', space=sflag, size = 0x4, offset = 0, fixed_abs, tag = 'sflag constant byte address 0x0 - dummy sync flag']
  #allocation66 [shape = 's32[]', space=sflag, size = 0x4, offset = 0, fixed_abs, tag = 'sflag constant byte address 0x0 - dummy sync flag']
  #allocation67 [shape = 's32[]', space=sflag, size = 0x4, offset = 0, fixed_abs, tag = 'sflag constant byte address 0x0 - dummy sync flag']
  #allocation68 [shape = 's32[]', space=sflag, size = 0x4, offset = 0, fixed_abs, tag = 'sflag constant byte address 0x0 - dummy sync flag']
  #allocation69 [shape = 's32[]', space=sflag, size = 0x4, offset = 0, fixed_abs, tag = 'sflag constant byte address 0x0 - dummy sync flag']
  #allocation70 [shape = 's32[]', space=sflag, size = 0x4, offset = 0, fixed_abs, tag = 'sflag constant byte address 0x0 - dummy sync flag']
  #allocation71 [shape = 's32[]', space=sflag, size = 0x4, offset = 0, fixed_abs, tag = 'sflag constant byte address 0x0 - dummy sync flag']
  #allocation72 [shape = 's32[]', space=sflag, size = 0x4, offset = 0, fixed_abs, tag = 'sflag constant byte address 0x0 - dummy sync flag']
  #allocation73 [shape = 's32[]', space=sflag, size = 0x4, offset = 0, fixed_abs, tag = 'sflag constant byte address 0x0 - dummy sync flag']
  #allocation74 [shape = 's32[]', space=sflag, size = 0x4, offset = 0, fixed_abs, tag = 'sflag constant byte address 0x0 - dummy sync flag']
  #allocation75 [shape = 's32[]', space=sflag, size = 0x4, offset = 0, fixed_abs, tag = 'sflag constant byte address 0x0 - dummy sync flag']
  #allocation76 [shape = 's32[]', space=sflag, size = 0x4, offset = 0, fixed_abs, tag = 'sflag constant byte address 0x0 - dummy sync flag']
  #allocation77 [shape = 's32[]', space=sflag, size = 0x4, offset = 0, fixed_abs, tag = 'sflag constant byte address 0x0 - dummy sync flag']
  #allocation78 [shape = 's32[]', space=sflag, size = 0x4, offset = 0, fixed_abs, tag = 'sflag constant byte address 0x0 - dummy sync flag']
  #allocation79 [shape = 's32[]', space=sflag, size = 0x4, offset = 0, fixed_abs, tag = 'sflag constant byte address 0x0 - dummy sync flag']
  %s0 = inlined_call_operand.hbm [shape: s32[16], index: 0, kind: input, shape index: {}]
  %s1 = inlined_call_operand.vmem [shape: s32[16], index: 1, kind: input, shape index: {}]
  %s2 = inlined_call_operand.hbm [shape: f32[32,32], index: 2, kind: input, shape index: {}]
  %s3 = inlined_call_operand.hbm [shape: f32[32,128], index: 3, kind: input, shape index: {}]
  %s4 = inlined_call_operand.hbm [shape: f32[32,128], index: 4, kind: input, shape index: {}]
  %s5 = inlined_call_operand.vmem [shape: f32[1,128], index: 5, kind: input, shape index: {}]
  %s6 = inlined_call_operand.hbm [shape: f32[16,128], index: 6, kind: output, shape index: {}]
  %s7 = sld [smem:[#allocation0]]
  $region189: #{tpu_custom_call.1} parent=0
    _
  %s9 = ssub.s32 1, %s7
  %s10 = scalar_select 0, %s9, %s7
  %12 = dma.hbm_to_smem %s0, 16, [#allocation6], [#allocation5]
  %s13 = sshll.u32 %s1, 4
  %s14 = int_to_ptr.vmem [resolvable:$true] %s13
  %16 = dma.vmem_to_smem %s14, 16, [#allocation7], [#allocation5]
  %17 = dma.done [#allocation5], 32
  %18 = sfence
  $region1: #{tpu_custom_call.1} parent=0
    #allocation8 [shape = 'u8[16384]{0}', space=vmem, size = 0x4000, scoped, tag = 'input window, operand 3, single buffered']
    #allocation9 [shape = 's32[2]{0}', space=sflag, size = 0x8, scoped, tag = 'scoped memory for tpu_custom_call.1']
    #allocation10 [shape = 's32[2]{0}', space=sflag, size = 0x8, scoped, tag = 'scoped memory for tpu_custom_call.1']
    #allocation11 [shape = 'u8[16384]{0}', space=vmem, size = 0x4000, scoped, tag = 'input window, operand 4, single buffered']
    #allocation12 [shape = 's32[1]{0}', space=sflag, size = 0x4, scoped, tag = 'scoped memory for tpu_custom_call.1']
    #allocation13 [shape = 'u8[8192]{0}', space=vmem, size = 0x2000, scoped, tag = 'output window, operand 0']
    %19 = vsyncpa [#allocation9], 0
    %20 = vsyncpa [#allocation12], 0
    %21 = vsyncpa [#allocation10], 0
    %s22 = scalar_lea.sflag [#allocation10], 1
    %23 = vsyncpa %s22, 0
    loop: start=0, step=1, limit=4
    $region2: #{tpu_custom_call.1} parent=1 // loop_pre_header
      _
    $region3: #{tpu_custom_call.1} parent=1 // loop_header
      %s25 = sphi 0, %s29
      %p26 = scmp.ge.s32.totalorder %s25, 4
      %s33 = sphi 0, %s33
      %s35 = sphi 0, %s33
      %s36 = sphi 0, %s35
      %s50 = sphi 0, %s36
      %s54 = sphi 0, %s54
      %s56 = sphi 0, %s54
      %s57 = sphi 0, %s56
      %s71 = sphi 0, %s57
      %s75 = sphi 0, %s75
      %s77 = sphi 0, %s75
      %s78 = sphi 0, %s77
      %s92 = sphi 0, %s78
      %s98 = sphi 0, %s100
      %s101 = sphi 0, %s98
      %s102 = sphi 0, %s101
      %s118 = sphi 0, %s102
    $region4: #{tpu_custom_call.1} parent=1 // loop_header_branch
      %28 = sbr.rel (%p26) target = $region8
    $region5: #{tpu_custom_call.1} parent=1 // loop_body
      %s30 = ssub.s32 %s25, 1
      %s31 = ssub.s32 %s25, 2
      %s32 = sadd.s32 %s25, 1
      %s34 = sadd.s32 %s33, 1
      %p37 = scmp.eq.s32.totalorder %s25, 1
      %p38 = scmp.ne.s32.totalorder %s33, %s35
      %p39 = scmp.eq.s32.totalorder %s25, 0
      %p40 = por %p38, %p39
      %p41 = scmp.ne.s32.totalorder %s33, %s35
      %p42 = scmp.eq.s32.totalorder %s30, 1
      %p43 = por %p41, %p42
      %p44 = scmp.ne.s32.totalorder %s35, %s36
      %p45 = scmp.eq.s32.totalorder %s30, 0
      %p46 = por %p44, %p45
      %p47 = scmp.ne.s32.totalorder %s35, %s36
      %p48 = scmp.eq.s32.totalorder %s31, 1
      %p49 = por %p47, %p48
      %p51 = scmp.ne.s32.totalorder %s36, %s50
      %p52 = scmp.eq.s32.totalorder %s31, 0
      %p53 = por %p51, %p52
      %s55 = sadd.s32 %s54, 1
      %p58 = scmp.eq.s32.totalorder %s25, 1
      %p59 = scmp.ne.s32.totalorder %s54, %s56
      %p60 = scmp.eq.s32.totalorder %s25, 0
      %p61 = por %p59, %p60
      %p62 = scmp.ne.s32.totalorder %s54, %s56
      %p63 = scmp.eq.s32.totalorder %s30, 1
      %p64 = por %p62, %p63
      %p65 = scmp.ne.s32.totalorder %s56, %s57
      %p66 = scmp.eq.s32.totalorder %s30, 0
      %p67 = por %p65, %p66
      %p68 = scmp.ne.s32.totalorder %s56, %s57
      %p69 = scmp.eq.s32.totalorder %s31, 1
      %p70 = por %p68, %p69
      %p72 = scmp.ne.s32.totalorder %s57, %s71
      %p73 = scmp.eq.s32.totalorder %s31, 0
      %p74 = por %p72, %p73
      %s76 = sadd.s32 %s75, 1
      %p79 = scmp.eq.s32.totalorder %s25, 1
      %p80 = scmp.ne.s32.totalorder %s75, %s77
      %p81 = scmp.eq.s32.totalorder %s25, 0
      %p82 = por %p80, %p81
      %p83 = scmp.ne.s32.totalorder %s75, %s77
      %p84 = scmp.eq.s32.totalorder %s30, 1
      %p85 = por %p83, %p84
      %p86 = scmp.ne.s32.totalorder %s77, %s78
      %p87 = scmp.eq.s32.totalorder %s30, 0
      %p88 = por %p86, %p87
      %p89 = scmp.ne.s32.totalorder %s77, %s78
      %p90 = scmp.eq.s32.totalorder %s31, 1
      %p91 = por %p89, %p90
      %p93 = scmp.ne.s32.totalorder %s78, %s92
      %p94 = scmp.eq.s32.totalorder %s31, 0
      %p95 = por %p93, %p94
      %s96 = ssub.s32 %s25, %s32
      %p97 = scmp.eq.s32.totalorder %s96, 0
      %s99 = sadd.s32 %s98, 1
      %s100 = scalar_select %p97, %s98, %s99
      %p103 = pneg %p97
      %p104 = scmp.eq.s32.totalorder %s25, 1
      %p105 = por %p103, %p104
      %p106 = scmp.ne.s32.totalorder %s98, %s101
      %p107 = scmp.eq.s32.totalorder %s25, 0
      %p108 = por %p106, %p107
      %p109 = scmp.ne.s32.totalorder %s98, %s101
      %p110 = scmp.eq.s32.totalorder %s30, 1
      %p111 = por %p109, %p110
      %p112 = scmp.ne.s32.totalorder %s101, %s102
      %p113 = scmp.eq.s32.totalorder %s30, 0
      %p114 = por %p112, %p113
      %p115 = scmp.ne.s32.totalorder %s101, %s102
      %p116 = scmp.eq.s32.totalorder %s31, 1
      %p117 = por %p115, %p116
      %p119 = scmp.ne.s32.totalorder %s102, %s118
      %p120 = scmp.eq.s32.totalorder %s31, 0
      %p121 = por %p119, %p120
      %p122 = scmp.le.s32.totalorder 1, %s25
      %p123 = scmp.lt.s32.totalorder %s25, 3
      %p124 = pnand %p122, %p123
      %p125 = pneg %p124
      // Predicated region
      $region9: #{tpu_custom_call.1} parent=5 // pred_check
        _
      $region10: #{tpu_custom_call.1} parent=5 // pred_check_branch
        %127 = sbr.rel (%p124) target = $region12
      $region11: #{tpu_custom_call.1} parent=5 // pred_region
        %s128 = ssub.s32 %s25, 1
        // Predicated region
        $region13: #{tpu_custom_call.1} parent=11 // pred_check
          %p129 = pneg %p46
        $region14: #{tpu_custom_call.1} parent=11 // pred_check_branch
          %131 = sbr.rel (%p129) target = $region16
        $region15: #{tpu_custom_call.1} parent=11 // pred_region
          %s133 = ssub.s32 512, 512
          %134 = vsyncadd [#allocation9], %s133
          %s135 = sshll.u32 [#allocation8], 4
          %s136 = int_to_ptr.vmem [resolvable:$true] %s135
          %141 = dma.hbm_to_vmem [thread:$0]  %s3, 512, %s136, [#allocation9], 128, 128, 8
        $region16: #{tpu_custom_call.1} parent=11 // pred_fallthru
          _
        // Predicated region
        $region17: #{tpu_custom_call.1} parent=11 // pred_check
          %p142 = pneg %p67
        $region18: #{tpu_custom_call.1} parent=11 // pred_check_branch
          %144 = sbr.rel (%p142) target = $region20
        $region19: #{tpu_custom_call.1} parent=11 // pred_region
          %s146 = ssub.s32 512, 512
          %147 = vsyncadd [#allocation12], %s146
          %s148 = sshll.u32 [#allocation11], 4
          %s149 = int_to_ptr.vmem [resolvable:$true] %s148
          %154 = dma.hbm_to_vmem [thread:$0]  %s4, 512, %s149, [#allocation12], 128, 128, 8
        $region20: #{tpu_custom_call.1} parent=11 // pred_fallthru
          _
        // Predicated region
        $region21: #{tpu_custom_call.1} parent=11 // pred_check
          %p155 = pneg %p88
        $region22: #{tpu_custom_call.1} parent=11 // pred_check_branch
          %157 = sbr.rel (%p155) target = $region24
        $region23: #{tpu_custom_call.1} parent=11 // pred_region
          _
        $region24: #{tpu_custom_call.1} parent=11 // pred_fallthru
          _
      $region12: #{tpu_custom_call.1} parent=5 // pred_fallthru
        _
      %p158 = scmp.lt.s32.totalorder %s25, 2
      // Predicated region
      $region25: #{tpu_custom_call.1} parent=5 // pred_check
        %p159 = pneg %p158
      $region26: #{tpu_custom_call.1} parent=5 // pred_check_branch
        %161 = sbr.rel (%p159) target = $region28
      $region27: #{tpu_custom_call.1} parent=5 // pred_region
        _
      $region28: #{tpu_custom_call.1} parent=5 // pred_fallthru
        _
      %p162 = scmp.le.s32.totalorder 1, %s25
      %p163 = scmp.lt.s32.totalorder %s25, 3
      %p164 = pnand %p162, %p163
      %p165 = pneg %p164
      // Predicated region
      $region29: #{tpu_custom_call.1} parent=5 // pred_check
        _
      $region30: #{tpu_custom_call.1} parent=5 // pred_check_branch
        %167 = sbr.rel (%p164) target = $region32
      $region31: #{tpu_custom_call.1} parent=5 // pred_region
        %s168 = ssub.s32 %s25, 1
        // Predicated region
        $region33: #{tpu_custom_call.1} parent=31 // pred_check
          %p169 = pneg %p46
        $region34: #{tpu_custom_call.1} parent=31 // pred_check_branch
          %171 = sbr.rel (%p169) target = $region36
        $region35: #{tpu_custom_call.1} parent=31 // pred_region
          %172 = dma.done [#allocation9], 512
        $region36: #{tpu_custom_call.1} parent=31 // pred_fallthru
          _
        // Predicated region
        $region37: #{tpu_custom_call.1} parent=31 // pred_check
          %p173 = pneg %p67
        $region38: #{tpu_custom_call.1} parent=31 // pred_check_branch
          %175 = sbr.rel (%p173) target = $region40
        $region39: #{tpu_custom_call.1} parent=31 // pred_region
          %176 = dma.done [#allocation12], 512
        $region40: #{tpu_custom_call.1} parent=31 // pred_fallthru
          _
        %p177 = pneg %p46
        %p178 = pneg %p43
        %p179 = pneg %p67
        %p180 = pneg %p64
        %p181 = pneg %p88
        %p182 = pneg %p85
        %p183 = pneg %p114
        %p184 = pneg %p111
        %s185 = sand.u32 %s101, 1
        %s186 = scalar_lea.sflag [#allocation10], %s185
        %s187 = sand.u32 %s101, 1
        %s188 = smul.addr %s187, 8
        %s189 = scalar_lea.vmem [#allocation13], %s188
        %s190 = sand.u32 %s30, 1
        %p191 = scmp.eq.s32.totalorder %s30, 0
        // Predicated region
        $region41: #{tpu_custom_call.1} parent=31 // pred_check
          %p192 = pneg %p191
        $region42: #{tpu_custom_call.1} parent=31 // pred_check_branch
          %194 = sbr.rel (%p192) target = $region44
        $region43: #{tpu_custom_call.1} parent=31 // pred_region
          %s195 = sld [smem:[#allocation6]]
          %s196 = sld [smem:[#allocation7]]
          %s197 = smul.addr %s195, 16
          %s198 = scalar_lea.hbm %s2, %s197
          // Predicated region
          $region45: #{tpu_custom_call.1} parent=43 // pred_check
            _
          $region46: #{tpu_custom_call.1} parent=43 // pred_check_branch
            %200 = sbr.rel target = $region48
          $region47: #{tpu_custom_call.1} parent=43 // pred_region
            %201 = sst [smem:[#allocation16]] [#allocation15]
            %202 = sst [smem:[#allocation17]] [#allocation14]
          $region48: #{tpu_custom_call.1} parent=43 // pred_fallthru
            _
          %204 = shalt.err (0)
          %s206 = sshll.u32 [#allocation2], 4
          %s207 = int_to_ptr.vmem [resolvable:$true] %s206
          %209 = dma.hbm_to_vmem [thread:$0]  %s198, 16, %s207, [#allocation4]
          %s210 = smul.addr %s196, 16
          %s211 = scalar_lea.hbm %s2, %s210
          %s212 = scalar_lea.sflag [#allocation4], 2
          // Predicated region
          $region49: #{tpu_custom_call.1} parent=43 // pred_check
            _
          $region50: #{tpu_custom_call.1} parent=43 // pred_check_branch
            %214 = sbr.rel target = $region52
          $region51: #{tpu_custom_call.1} parent=43 // pred_region
            %215 = sst [smem:[#allocation16]] [#allocation19]
            %216 = sst [smem:[#allocation17]] [#allocation18]
          $region52: #{tpu_custom_call.1} parent=43 // pred_fallthru
            _
          %218 = shalt.err (0)
          %s220 = sshll.u32 [#allocation3], 4
          %s221 = int_to_ptr.vmem [resolvable:$true] %s220
          %223 = dma.hbm_to_vmem [thread:$0]  %s211, 16, %s221, %s212
          %s224 = sld [smem:[#allocation6 + $0x1]]
          %s225 = sld [smem:[#allocation7 + $0x1]]
          %s226 = smul.addr %s224, 16
          %s227 = scalar_lea.hbm %s2, %s226
          %s228 = scalar_lea.vmem [#allocation2], 1
          // Predicated region
          $region53: #{tpu_custom_call.1} parent=43 // pred_check
            _
          $region54: #{tpu_custom_call.1} parent=43 // pred_check_branch
            %230 = sbr.rel target = $region56
          $region55: #{tpu_custom_call.1} parent=43 // pred_region
            %231 = sst [smem:[#allocation16]] [#allocation21]
            %232 = sst [smem:[#allocation17]] [#allocation20]
          $region56: #{tpu_custom_call.1} parent=43 // pred_fallthru
            _
          %234 = shalt.err (0)
          %s236 = sshll.u32 %s228, 4
          %s237 = int_to_ptr.vmem [resolvable:$true] %s236
          %239 = dma.hbm_to_vmem [thread:$0]  %s227, 16, %s237, [#allocation4]
          %s240 = smul.addr %s225, 16
          %s241 = scalar_lea.hbm %s2, %s240
          %s242 = scalar_lea.vmem [#allocation3], 1
          // Predicated region
          $region57: #{tpu_custom_call.1} parent=43 // pred_check
            _
          $region58: #{tpu_custom_call.1} parent=43 // pred_check_branch
            %244 = sbr.rel target = $region60
          $region59: #{tpu_custom_call.1} parent=43 // pred_region
            %245 = sst [smem:[#allocation16]] [#allocation23]
            %246 = sst [smem:[#allocation17]] [#allocation22]
          $region60: #{tpu_custom_call.1} parent=43 // pred_fallthru
            _
          %248 = shalt.err (0)
          %s250 = sshll.u32 %s242, 4
          %s251 = int_to_ptr.vmem [resolvable:$true] %s250
          %253 = dma.hbm_to_vmem [thread:$0]  %s241, 16, %s251, %s212
          %s254 = sld [smem:[#allocation6 + $0x2]]
          %s255 = sld [smem:[#allocation7 + $0x2]]
          %s256 = smul.addr %s254, 16
          %s257 = scalar_lea.hbm %s2, %s256
          %s258 = scalar_lea.vmem [#allocation2], 2
          // Predicated region
          $region61: #{tpu_custom_call.1} parent=43 // pred_check
            _
          $region62: #{tpu_custom_call.1} parent=43 // pred_check_branch
            %260 = sbr.rel target = $region64
          $region63: #{tpu_custom_call.1} parent=43 // pred_region
            %261 = sst [smem:[#allocation16]] [#allocation25]
            %262 = sst [smem:[#allocation17]] [#allocation24]
          $region64: #{tpu_custom_call.1} parent=43 // pred_fallthru
            _
          %264 = shalt.err (0)
          %s266 = sshll.u32 %s258, 4
          %s267 = int_to_ptr.vmem [resolvable:$true] %s266
          %269 = dma.hbm_to_vmem [thread:$0]  %s257, 16, %s267, [#allocation4]
          %s270 = smul.addr %s255, 16
          %s271 = scalar_lea.hbm %s2, %s270
          %s272 = scalar_lea.vmem [#allocation3], 2
          // Predicated region
          $region65: #{tpu_custom_call.1} parent=43 // pred_check
            _
          $region66: #{tpu_custom_call.1} parent=43 // pred_check_branch
            %274 = sbr.rel target = $region68
          $region67: #{tpu_custom_call.1} parent=43 // pred_region
            %275 = sst [smem:[#allocation16]] [#allocation27]
            %276 = sst [smem:[#allocation17]] [#allocation26]
          $region68: #{tpu_custom_call.1} parent=43 // pred_fallthru
            _
          %278 = shalt.err (0)
          %s280 = sshll.u32 %s272, 4
          %s281 = int_to_ptr.vmem [resolvable:$true] %s280
          %283 = dma.hbm_to_vmem [thread:$0]  %s271, 16, %s281, %s212
          %s284 = sld [smem:[#allocation6 + $0x3]]
          %s285 = sld [smem:[#allocation7 + $0x3]]
          %s286 = smul.addr %s284, 16
          %s287 = scalar_lea.hbm %s2, %s286
          %s288 = scalar_lea.vmem [#allocation2], 3
          // Predicated region
          $region69: #{tpu_custom_call.1} parent=43 // pred_check
            _
          $region70: #{tpu_custom_call.1} parent=43 // pred_check_branch
            %290 = sbr.rel target = $region72
          $region71: #{tpu_custom_call.1} parent=43 // pred_region
            %291 = sst [smem:[#allocation16]] [#allocation29]
            %292 = sst [smem:[#allocation17]] [#allocation28]
          $region72: #{tpu_custom_call.1} parent=43 // pred_fallthru
            _
          %294 = shalt.err (0)
          %s296 = sshll.u32 %s288, 4
          %s297 = int_to_ptr.vmem [resolvable:$true] %s296
          %299 = dma.hbm_to_vmem [thread:$0]  %s287, 16, %s297, [#allocation4]
          %s300 = smul.addr %s285, 16
          %s301 = scalar_lea.hbm %s2, %s300
          %s302 = scalar_lea.vmem [#allocation3], 3
          // Predicated region
          $region73: #{tpu_custom_call.1} parent=43 // pred_check
            _
          $region74: #{tpu_custom_call.1} parent=43 // pred_check_branch
            %304 = sbr.rel target = $region76
          $region75: #{tpu_custom_call.1} parent=43 // pred_region
            %305 = sst [smem:[#allocation16]] [#allocation31]
            %306 = sst [smem:[#allocation17]] [#allocation30]
          $region76: #{tpu_custom_call.1} parent=43 // pred_fallthru
            _
          %308 = shalt.err (0)
          %s310 = sshll.u32 %s302, 4
          %s311 = int_to_ptr.vmem [resolvable:$true] %s310
          %313 = dma.hbm_to_vmem [thread:$0]  %s301, 16, %s311, %s212
          %s314 = sld [smem:[#allocation6 + $0x4]]
          %s315 = sld [smem:[#allocation7 + $0x4]]
          %s316 = smul.addr %s314, 16
          %s317 = scalar_lea.hbm %s2, %s316
          %s318 = scalar_lea.vmem [#allocation2], 4
          // Predicated region
          $region77: #{tpu_custom_call.1} parent=43 // pred_check
            _
          $region78: #{tpu_custom_call.1} parent=43 // pred_check_branch
            %320 = sbr.rel target = $region80
          $region79: #{tpu_custom_call.1} parent=43 // pred_region
            %321 = sst [smem:[#allocation16]] [#allocation33]
            %322 = sst [smem:[#allocation17]] [#allocation32]
          $region80: #{tpu_custom_call.1} parent=43 // pred_fallthru
            _
          %324 = shalt.err (0)
          %s326 = sshll.u32 %s318, 4
          %s327 = int_to_ptr.vmem [resolvable:$true] %s326
          %329 = dma.hbm_to_vmem [thread:$0]  %s317, 16, %s327, [#allocation4]
          %s330 = smul.addr %s315, 16
          %s331 = scalar_lea.hbm %s2, %s330
          %s332 = scalar_lea.vmem [#allocation3], 4
          // Predicated region
          $region81: #{tpu_custom_call.1} parent=43 // pred_check
            _
          $region82: #{tpu_custom_call.1} parent=43 // pred_check_branch
            %334 = sbr.rel target = $region84
          $region83: #{tpu_custom_call.1} parent=43 // pred_region
            %335 = sst [smem:[#allocation16]] [#allocation35]
            %336 = sst [smem:[#allocation17]] [#allocation34]
          $region84: #{tpu_custom_call.1} parent=43 // pred_fallthru
            _
          %338 = shalt.err (0)
          %s340 = sshll.u32 %s332, 4
          %s341 = int_to_ptr.vmem [resolvable:$true] %s340
          %343 = dma.hbm_to_vmem [thread:$0]  %s331, 16, %s341, %s212
          %s344 = sld [smem:[#allocation6 + $0x5]]
          %s345 = sld [smem:[#allocation7 + $0x5]]
          %s346 = smul.addr %s344, 16
          %s347 = scalar_lea.hbm %s2, %s346
          %s348 = scalar_lea.vmem [#allocation2], 5
          // Predicated region
          $region85: #{tpu_custom_call.1} parent=43 // pred_check
            _
          $region86: #{tpu_custom_call.1} parent=43 // pred_check_branch
            %350 = sbr.rel target = $region88
          $region87: #{tpu_custom_call.1} parent=43 // pred_region
            %351 = sst [smem:[#allocation16]] [#allocation37]
            %352 = sst [smem:[#allocation17]] [#allocation36]
          $region88: #{tpu_custom_call.1} parent=43 // pred_fallthru
            _
          %354 = shalt.err (0)
          %s356 = sshll.u32 %s348, 4
          %s357 = int_to_ptr.vmem [resolvable:$true] %s356
          %359 = dma.hbm_to_vmem [thread:$0]  %s347, 16, %s357, [#allocation4]
          %s360 = smul.addr %s345, 16
          %s361 = scalar_lea.hbm %s2, %s360
          %s362 = scalar_lea.vmem [#allocation3], 5
          // Predicated region
          $region89: #{tpu_custom_call.1} parent=43 // pred_check
            _
          $region90: #{tpu_custom_call.1} parent=43 // pred_check_branch
            %364 = sbr.rel target = $region92
          $region91: #{tpu_custom_call.1} parent=43 // pred_region
            %365 = sst [smem:[#allocation16]] [#allocation39]
            %366 = sst [smem:[#allocation17]] [#allocation38]
          $region92: #{tpu_custom_call.1} parent=43 // pred_fallthru
            _
          %368 = shalt.err (0)
          %s370 = sshll.u32 %s362, 4
          %s371 = int_to_ptr.vmem [resolvable:$true] %s370
          %373 = dma.hbm_to_vmem [thread:$0]  %s361, 16, %s371, %s212
          %s374 = sld [smem:[#allocation6 + $0x6]]
          %s375 = sld [smem:[#allocation7 + $0x6]]
          %s376 = smul.addr %s374, 16
          %s377 = scalar_lea.hbm %s2, %s376
          %s378 = scalar_lea.vmem [#allocation2], 6
          // Predicated region
          $region93: #{tpu_custom_call.1} parent=43 // pred_check
            _
          $region94: #{tpu_custom_call.1} parent=43 // pred_check_branch
            %380 = sbr.rel target = $region96
          $region95: #{tpu_custom_call.1} parent=43 // pred_region
            %381 = sst [smem:[#allocation16]] [#allocation41]
            %382 = sst [smem:[#allocation17]] [#allocation40]
          $region96: #{tpu_custom_call.1} parent=43 // pred_fallthru
            _
          %384 = shalt.err (0)
          %s386 = sshll.u32 %s378, 4
          %s387 = int_to_ptr.vmem [resolvable:$true] %s386
          %389 = dma.hbm_to_vmem [thread:$0]  %s377, 16, %s387, [#allocation4]
          %s390 = smul.addr %s375, 16
          %s391 = scalar_lea.hbm %s2, %s390
          %s392 = scalar_lea.vmem [#allocation3], 6
          // Predicated region
          $region97: #{tpu_custom_call.1} parent=43 // pred_check
            _
          $region98: #{tpu_custom_call.1} parent=43 // pred_check_branch
            %394 = sbr.rel target = $region100
          $region99: #{tpu_custom_call.1} parent=43 // pred_region
            %395 = sst [smem:[#allocation16]] [#allocation43]
            %396 = sst [smem:[#allocation17]] [#allocation42]
          $region100: #{tpu_custom_call.1} parent=43 // pred_fallthru
            _
          %398 = shalt.err (0)
          %s400 = sshll.u32 %s392, 4
          %s401 = int_to_ptr.vmem [resolvable:$true] %s400
          %403 = dma.hbm_to_vmem [thread:$0]  %s391, 16, %s401, %s212
          %s404 = sld [smem:[#allocation6 + $0x7]]
          %s405 = sld [smem:[#allocation7 + $0x7]]
          %s406 = smul.addr %s404, 16
          %s407 = scalar_lea.hbm %s2, %s406
          %s408 = scalar_lea.vmem [#allocation2], 7
          // Predicated region
          $region101: #{tpu_custom_call.1} parent=43 // pred_check
            _
          $region102: #{tpu_custom_call.1} parent=43 // pred_check_branch
            %410 = sbr.rel target = $region104
          $region103: #{tpu_custom_call.1} parent=43 // pred_region
            %411 = sst [smem:[#allocation16]] [#allocation45]
            %412 = sst [smem:[#allocation17]] [#allocation44]
          $region104: #{tpu_custom_call.1} parent=43 // pred_fallthru
            _
          %414 = shalt.err (0)
          %s416 = sshll.u32 %s408, 4
          %s417 = int_to_ptr.vmem [resolvable:$true] %s416
          %419 = dma.hbm_to_vmem [thread:$0]  %s407, 16, %s417, [#allocation4]
          %s420 = smul.addr %s405, 16
          %s421 = scalar_lea.hbm %s2, %s420
          %s422 = scalar_lea.vmem [#allocation3], 7
          // Predicated region
          $region105: #{tpu_custom_call.1} parent=43 // pred_check
            _
          $region106: #{tpu_custom_call.1} parent=43 // pred_check_branch
            %424 = sbr.rel target = $region108
          $region107: #{tpu_custom_call.1} parent=43 // pred_region
            %425 = sst [smem:[#allocation16]] [#allocation47]
            %426 = sst [smem:[#allocation17]] [#allocation46]
          $region108: #{tpu_custom_call.1} parent=43 // pred_fallthru
            _
          %428 = shalt.err (0)
          %s430 = sshll.u32 %s422, 4
          %s431 = int_to_ptr.vmem [resolvable:$true] %s430
          %433 = dma.hbm_to_vmem [thread:$0]  %s421, 16, %s431, %s212
        $region44: #{tpu_custom_call.1} parent=31 // pred_fallthru
          _
        %s434 = sadd.s32 %s30, 1
        %p435 = scmp.lt.s32.totalorder %s434, 2
        // Predicated region
        $region109: #{tpu_custom_call.1} parent=31 // pred_check
          %p436 = pneg %p435
        $region110: #{tpu_custom_call.1} parent=31 // pred_check_branch
          %438 = sbr.rel (%p436) target = $region112
        $region111: #{tpu_custom_call.1} parent=31 // pred_region
          %s439 = sand.u32 %s434, 1
          %s440 = smul.u32 %s434, 8
          %s441 = smul.u32 %s439, 8
          %s442 = sld [smem:[#allocation6 + %s440]]
          %s443 = sld [smem:[#allocation7 + %s440]]
          %s444 = smul.addr %s442, 16
          %s445 = scalar_lea.hbm %s2, %s444
          %s446 = scalar_lea.vmem [#allocation2], %s441
          %s447 = scalar_lea.sflag [#allocation4], %s439
          // Predicated region
          $region113: #{tpu_custom_call.1} parent=111 // pred_check
            _
          $region114: #{tpu_custom_call.1} parent=111 // pred_check_branch
            %449 = sbr.rel target = $region116
          $region115: #{tpu_custom_call.1} parent=111 // pred_region
            %450 = sst [smem:[#allocation16]] [#allocation49]
            %451 = sst [smem:[#allocation17]] [#allocation48]
          $region116: #{tpu_custom_call.1} parent=111 // pred_fallthru
            _
          %453 = shalt.err (0)
          %s455 = sshll.u32 %s446, 4
          %s456 = int_to_ptr.vmem [resolvable:$true] %s455
          %458 = dma.hbm_to_vmem [thread:$0]  %s445, 16, %s456, %s447
          %s459 = smul.addr %s443, 16
          %s460 = scalar_lea.hbm %s2, %s459
          %s461 = scalar_lea.vmem [#allocation3], %s441
          %s462 = sadd.s32 %s439, 2
          %s463 = scalar_lea.sflag [#allocation4], %s462
          // Predicated region
          $region117: #{tpu_custom_call.1} parent=111 // pred_check
            _
          $region118: #{tpu_custom_call.1} parent=111 // pred_check_branch
            %465 = sbr.rel target = $region120
          $region119: #{tpu_custom_call.1} parent=111 // pred_region
            %466 = sst [smem:[#allocation16]] [#allocation51]
            %467 = sst [smem:[#allocation17]] [#allocation50]
          $region120: #{tpu_custom_call.1} parent=111 // pred_fallthru
            _
          %469 = shalt.err (0)
          %s471 = sshll.u32 %s461, 4
          %s472 = int_to_ptr.vmem [resolvable:$true] %s471
          %474 = dma.hbm_to_vmem [thread:$0]  %s460, 16, %s472, %s463
          %s475 = sadd.s32 %s440, 1
          %s476 = sld [smem:[#allocation6 + %s475]]
          %s477 = sld [smem:[#allocation7 + %s475]]
          %s478 = sadd.s32 %s441, 1
          %s479 = smul.addr %s476, 16
          %s480 = scalar_lea.hbm %s2, %s479
          %s481 = scalar_lea.vmem [#allocation2], %s478
          // Predicated region
          $region121: #{tpu_custom_call.1} parent=111 // pred_check
            _
          $region122: #{tpu_custom_call.1} parent=111 // pred_check_branch
            %483 = sbr.rel target = $region124
          $region123: #{tpu_custom_call.1} parent=111 // pred_region
            %484 = sst [smem:[#allocation16]] [#allocation53]
            %485 = sst [smem:[#allocation17]] [#allocation52]
          $region124: #{tpu_custom_call.1} parent=111 // pred_fallthru
            _
          %487 = shalt.err (0)
          %s489 = sshll.u32 %s481, 4
          %s490 = int_to_ptr.vmem [resolvable:$true] %s489
          %492 = dma.hbm_to_vmem [thread:$0]  %s480, 16, %s490, %s447
          %s493 = smul.addr %s477, 16
          %s494 = scalar_lea.hbm %s2, %s493
          %s495 = scalar_lea.vmem [#allocation3], %s478
          // Predicated region
          $region125: #{tpu_custom_call.1} parent=111 // pred_check
            _
          $region126: #{tpu_custom_call.1} parent=111 // pred_check_branch
            %497 = sbr.rel target = $region128
          $region127: #{tpu_custom_call.1} parent=111 // pred_region
            %498 = sst [smem:[#allocation16]] [#allocation55]
            %499 = sst [smem:[#allocation17]] [#allocation54]
          $region128: #{tpu_custom_call.1} parent=111 // pred_fallthru
            _
          %501 = shalt.err (0)
          %s503 = sshll.u32 %s495, 4
          %s504 = int_to_ptr.vmem [resolvable:$true] %s503
          %506 = dma.hbm_to_vmem [thread:$0]  %s494, 16, %s504, %s463
          %s507 = sadd.s32 %s440, 2
          %s508 = sld [smem:[#allocation6 + %s507]]
          %s509 = sld [smem:[#allocation7 + %s507]]
          %s510 = sadd.s32 %s441, 2
          %s511 = smul.addr %s508, 16
          %s512 = scalar_lea.hbm %s2, %s511
          %s513 = scalar_lea.vmem [#allocation2], %s510
          // Predicated region
          $region129: #{tpu_custom_call.1} parent=111 // pred_check
            _
          $region130: #{tpu_custom_call.1} parent=111 // pred_check_branch
            %515 = sbr.rel target = $region132
          $region131: #{tpu_custom_call.1} parent=111 // pred_region
            %516 = sst [smem:[#allocation16]] [#allocation57]
            %517 = sst [smem:[#allocation17]] [#allocation56]
          $region132: #{tpu_custom_call.1} parent=111 // pred_fallthru
            _
          %519 = shalt.err (0)
          %s521 = sshll.u32 %s513, 4
          %s522 = int_to_ptr.vmem [resolvable:$true] %s521
          %524 = dma.hbm_to_vmem [thread:$0]  %s512, 16, %s522, %s447
          %s525 = smul.addr %s509, 16
          %s526 = scalar_lea.hbm %s2, %s525
          %s527 = scalar_lea.vmem [#allocation3], %s510
          // Predicated region
          $region133: #{tpu_custom_call.1} parent=111 // pred_check
            _
          $region134: #{tpu_custom_call.1} parent=111 // pred_check_branch
            %529 = sbr.rel target = $region136
          $region135: #{tpu_custom_call.1} parent=111 // pred_region
            %530 = sst [smem:[#allocation16]] [#allocation59]
            %531 = sst [smem:[#allocation17]] [#allocation58]
          $region136: #{tpu_custom_call.1} parent=111 // pred_fallthru
            _
          %533 = shalt.err (0)
          %s535 = sshll.u32 %s527, 4
          %s536 = int_to_ptr.vmem [resolvable:$true] %s535
          %538 = dma.hbm_to_vmem [thread:$0]  %s526, 16, %s536, %s463
          %s539 = sadd.s32 %s440, 3
          %s540 = sld [smem:[#allocation6 + %s539]]
          %s541 = sld [smem:[#allocation7 + %s539]]
          %s542 = sadd.s32 %s441, 3
          %s543 = smul.addr %s540, 16
          %s544 = scalar_lea.hbm %s2, %s543
          %s545 = scalar_lea.vmem [#allocation2], %s542
          // Predicated region
          $region137: #{tpu_custom_call.1} parent=111 // pred_check
            _
          $region138: #{tpu_custom_call.1} parent=111 // pred_check_branch
            %547 = sbr.rel target = $region140
          $region139: #{tpu_custom_call.1} parent=111 // pred_region
            %548 = sst [smem:[#allocation16]] [#allocation61]
            %549 = sst [smem:[#allocation17]] [#allocation60]
          $region140: #{tpu_custom_call.1} parent=111 // pred_fallthru
            _
          %551 = shalt.err (0)
          %s553 = sshll.u32 %s545, 4
          %s554 = int_to_ptr.vmem [resolvable:$true] %s553
          %556 = dma.hbm_to_vmem [thread:$0]  %s544, 16, %s554, %s447
          %s557 = smul.addr %s541, 16
          %s558 = scalar_lea.hbm %s2, %s557
          %s559 = scalar_lea.vmem [#allocation3], %s542
          // Predicated region
          $region141: #{tpu_custom_call.1} parent=111 // pred_check
            _
          $region142: #{tpu_custom_call.1} parent=111 // pred_check_branch
            %561 = sbr.rel target = $region144
          $region143: #{tpu_custom_call.1} parent=111 // pred_region
            %562 = sst [smem:[#allocation16]] [#allocation63]
            %563 = sst [smem:[#allocation17]] [#allocation62]
          $region144: #{tpu_custom_call.1} parent=111 // pred_fallthru
            _
          %565 = shalt.err (0)
          %s567 = sshll.u32 %s559, 4
          %s568 = int_to_ptr.vmem [resolvable:$true] %s567
          %570 = dma.hbm_to_vmem [thread:$0]  %s558, 16, %s568, %s463
          %s571 = sadd.s32 %s440, 4
          %s572 = sld [smem:[#allocation6 + %s571]]
          %s573 = sld [smem:[#allocation7 + %s571]]
          %s574 = sadd.s32 %s441, 4
          %s575 = smul.addr %s572, 16
          %s576 = scalar_lea.hbm %s2, %s575
          %s577 = scalar_lea.vmem [#allocation2], %s574
          // Predicated region
          $region145: #{tpu_custom_call.1} parent=111 // pred_check
            _
          $region146: #{tpu_custom_call.1} parent=111 // pred_check_branch
            %579 = sbr.rel target = $region148
          $region147: #{tpu_custom_call.1} parent=111 // pred_region
            %580 = sst [smem:[#allocation16]] [#allocation65]
            %581 = sst [smem:[#allocation17]] [#allocation64]
          $region148: #{tpu_custom_call.1} parent=111 // pred_fallthru
            _
          %583 = shalt.err (0)
          %s585 = sshll.u32 %s577, 4
          %s586 = int_to_ptr.vmem [resolvable:$true] %s585
          %588 = dma.hbm_to_vmem [thread:$0]  %s576, 16, %s586, %s447
          %s589 = smul.addr %s573, 16
          %s590 = scalar_lea.hbm %s2, %s589
          %s591 = scalar_lea.vmem [#allocation3], %s574
          // Predicated region
          $region149: #{tpu_custom_call.1} parent=111 // pred_check
            _
          $region150: #{tpu_custom_call.1} parent=111 // pred_check_branch
            %593 = sbr.rel target = $region152
          $region151: #{tpu_custom_call.1} parent=111 // pred_region
            %594 = sst [smem:[#allocation16]] [#allocation67]
            %595 = sst [smem:[#allocation17]] [#allocation66]
          $region152: #{tpu_custom_call.1} parent=111 // pred_fallthru
            _
          %597 = shalt.err (0)
          %s599 = sshll.u32 %s591, 4
          %s600 = int_to_ptr.vmem [resolvable:$true] %s599
          %602 = dma.hbm_to_vmem [thread:$0]  %s590, 16, %s600, %s463
          %s603 = sadd.s32 %s440, 5
          %s604 = sld [smem:[#allocation6 + %s603]]
          %s605 = sld [smem:[#allocation7 + %s603]]
          %s606 = sadd.s32 %s441, 5
          %s607 = smul.addr %s604, 16
          %s608 = scalar_lea.hbm %s2, %s607
          %s609 = scalar_lea.vmem [#allocation2], %s606
          // Predicated region
          $region153: #{tpu_custom_call.1} parent=111 // pred_check
            _
          $region154: #{tpu_custom_call.1} parent=111 // pred_check_branch
            %611 = sbr.rel target = $region156
          $region155: #{tpu_custom_call.1} parent=111 // pred_region
            %612 = sst [smem:[#allocation16]] [#allocation69]
            %613 = sst [smem:[#allocation17]] [#allocation68]
          $region156: #{tpu_custom_call.1} parent=111 // pred_fallthru
            _
          %615 = shalt.err (0)
          %s617 = sshll.u32 %s609, 4
          %s618 = int_to_ptr.vmem [resolvable:$true] %s617
          %620 = dma.hbm_to_vmem [thread:$0]  %s608, 16, %s618, %s447
          %s621 = smul.addr %s605, 16
          %s622 = scalar_lea.hbm %s2, %s621
          %s623 = scalar_lea.vmem [#allocation3], %s606
          // Predicated region
          $region157: #{tpu_custom_call.1} parent=111 // pred_check
            _
          $region158: #{tpu_custom_call.1} parent=111 // pred_check_branch
            %625 = sbr.rel target = $region160
          $region159: #{tpu_custom_call.1} parent=111 // pred_region
            %626 = sst [smem:[#allocation16]] [#allocation71]
            %627 = sst [smem:[#allocation17]] [#allocation70]
          $region160: #{tpu_custom_call.1} parent=111 // pred_fallthru
            _
          %629 = shalt.err (0)
          %s631 = sshll.u32 %s623, 4
          %s632 = int_to_ptr.vmem [resolvable:$true] %s631
          %634 = dma.hbm_to_vmem [thread:$0]  %s622, 16, %s632, %s463
          %s635 = sadd.s32 %s440, 6
          %s636 = sld [smem:[#allocation6 + %s635]]
          %s637 = sld [smem:[#allocation7 + %s635]]
          %s638 = sadd.s32 %s441, 6
          %s639 = smul.addr %s636, 16
          %s640 = scalar_lea.hbm %s2, %s639
          %s641 = scalar_lea.vmem [#allocation2], %s638
          // Predicated region
          $region161: #{tpu_custom_call.1} parent=111 // pred_check
            _
          $region162: #{tpu_custom_call.1} parent=111 // pred_check_branch
            %643 = sbr.rel target = $region164
          $region163: #{tpu_custom_call.1} parent=111 // pred_region
            %644 = sst [smem:[#allocation16]] [#allocation73]
            %645 = sst [smem:[#allocation17]] [#allocation72]
          $region164: #{tpu_custom_call.1} parent=111 // pred_fallthru
            _
          %647 = shalt.err (0)
          %s649 = sshll.u32 %s641, 4
          %s650 = int_to_ptr.vmem [resolvable:$true] %s649
          %652 = dma.hbm_to_vmem [thread:$0]  %s640, 16, %s650, %s447
          %s653 = smul.addr %s637, 16
          %s654 = scalar_lea.hbm %s2, %s653
          %s655 = scalar_lea.vmem [#allocation3], %s638
          // Predicated region
          $region165: #{tpu_custom_call.1} parent=111 // pred_check
            _
          $region166: #{tpu_custom_call.1} parent=111 // pred_check_branch
            %657 = sbr.rel target = $region168
          $region167: #{tpu_custom_call.1} parent=111 // pred_region
            %658 = sst [smem:[#allocation16]] [#allocation75]
            %659 = sst [smem:[#allocation17]] [#allocation74]
          $region168: #{tpu_custom_call.1} parent=111 // pred_fallthru
            _
          %661 = shalt.err (0)
          %s663 = sshll.u32 %s655, 4
          %s664 = int_to_ptr.vmem [resolvable:$true] %s663
          %666 = dma.hbm_to_vmem [thread:$0]  %s654, 16, %s664, %s463
          %s667 = sadd.s32 %s440, 7
          %s668 = sld [smem:[#allocation6 + %s667]]
          %s669 = sld [smem:[#allocation7 + %s667]]
          %s670 = sadd.s32 %s441, 7
          %s671 = smul.addr %s668, 16
          %s672 = scalar_lea.hbm %s2, %s671
          %s673 = scalar_lea.vmem [#allocation2], %s670
          // Predicated region
          $region169: #{tpu_custom_call.1} parent=111 // pred_check
            _
          $region170: #{tpu_custom_call.1} parent=111 // pred_check_branch
            %675 = sbr.rel target = $region172
          $region171: #{tpu_custom_call.1} parent=111 // pred_region
            %676 = sst [smem:[#allocation16]] [#allocation77]
            %677 = sst [smem:[#allocation17]] [#allocation76]
          $region172: #{tpu_custom_call.1} parent=111 // pred_fallthru
            _
          %679 = shalt.err (0)
          %s681 = sshll.u32 %s673, 4
          %s682 = int_to_ptr.vmem [resolvable:$true] %s681
          %684 = dma.hbm_to_vmem [thread:$0]  %s672, 16, %s682, %s447
          %s685 = smul.addr %s669, 16
          %s686 = scalar_lea.hbm %s2, %s685
          %s687 = scalar_lea.vmem [#allocation3], %s670
          // Predicated region
          $region173: #{tpu_custom_call.1} parent=111 // pred_check
            _
          $region174: #{tpu_custom_call.1} parent=111 // pred_check_branch
            %689 = sbr.rel target = $region176
          $region175: #{tpu_custom_call.1} parent=111 // pred_region
            %690 = sst [smem:[#allocation16]] [#allocation79]
            %691 = sst [smem:[#allocation17]] [#allocation78]
          $region176: #{tpu_custom_call.1} parent=111 // pred_fallthru
            _
          %693 = shalt.err (0)
          %s695 = sshll.u32 %s687, 4
          %s696 = int_to_ptr.vmem [resolvable:$true] %s695
          %698 = dma.hbm_to_vmem [thread:$0]  %s686, 16, %s696, %s463
        $region112: #{tpu_custom_call.1} parent=31 // pred_fallthru
          _
        %s699 = smul.u32 %s190, 8
        %s700 = scalar_lea.sflag [#allocation4], %s190
        %s701 = smul.u32 8, 1
        %s702 = sshll.u32 %s701, 4
        %703 = dma.done %s700, %s702
        %s704 = sadd.s32 %s190, 2
        %s705 = scalar_lea.sflag [#allocation4], %s704
        %s706 = sshll.u32 %s701, 4
        %707 = dma.done %s705, %s706
        %s708 = scalar_lea.vmem [#allocation2], %s699
        %v709 = vld [vmem:[%s708] sm:$0xff]
        %s710 = scalar_lea.vmem [#allocation3], %s699
        %v711 = vld [vmem:[%s710] sm:$0xff]
        %v712 = vld [vmem:[#allocation8] sm:$0xff]
        %v713 = vld [vmem:[#allocation8 + $0x8] sm:$0xff]
        %v714 = vld [vmem:[#allocation8 + $0x10] sm:$0xff]
        %v715 = vld [vmem:[#allocation8 + $0x18] sm:$0xff]
        %v716 = vld [vmem:[#allocation11] sm:$0xff]
        %v717 = vld [vmem:[#allocation11 + $0x8] sm:$0xff]
        %v718 = vld [vmem:[#allocation11 + $0x10] sm:$0xff]
        %v719 = vld [vmem:[#allocation11 + $0x18] sm:$0xff]
        %vm720 = vcmask 261120
        %v722 = vsel %vm720, %v711, 0
        %724 = vmatprep.subr.mxu0 0.0
        %725 = vmatpush1.msra.mxu0 %v716
        %726 = vmatprep.subr.mxu0 0.0
        %727 = vmatpush1.msra.mxu0 %v717
        %728 = vmatprep.subr.mxu0 0.0
        %729 = vmatpush1.msra.mxu0 %v718
        %730 = vmatprep.subr.mxu0 0.0
        %731 = vmatpush1.msra.mxu0 %v719
        %732 = vmatprep.subr.mxu0 0.0
        %733 = vmatpush1.msra.mxu0 0.0
        %734 = vmatprep.subr.mxu0 0.0
        %735 = vmatpush1.msra.mxu0 0.0
        %736 = vmatprep.subr.mxu0 0.0
        %737 = vmatpush1.msra.mxu0 0.0
        %738 = vmatprep.subr.mxu0 0.0
        %739 = vmatpush1.msra.mxu0 0.0
        %740 = vmatprep.subr.mxu0 0.0
        %741 = vmatpush1.msra.mxu0 0.0
        %742 = vmatprep.subr.mxu0 0.0
        %743 = vmatpush1.msra.mxu0 0.0
        %744 = vmatprep.subr.mxu0 0.0
        %745 = vmatpush1.msra.mxu0 0.0
        %746 = vmatprep.subr.mxu0 0.0
        %747 = vmatpush1.msra.mxu0 0.0
        %748 = vmatprep.subr.mxu0 0.0
        %749 = vmatpush1.msra.mxu0 0.0
        %750 = vmatprep.subr.mxu0 0.0
        %751 = vmatpush1.msra.mxu0 0.0
        %752 = vmatprep.subr.mxu0 0.0
        %753 = vmatpush1.msra.mxu0 0.0
        %754 = vmatprep.subr.mxu0 0.0
        %755 = vmatpush1.msra.mxu0 0.0
        %756 = vmatprep.subr.mxu0 0.0
        %757 = vmatpush1.msra.mxu0 0.0
        %758 = vmatprep.subr.mxu0 0.0
        %759 = vmatpush1.msra.mxu0 0.0
        %760 = vmatprep.subr.mxu0 0.0
        %761 = vmatpush1.msra.mxu0 0.0
        %762 = vmatprep.subr.mxu0 0.0
        %763 = vmatpush1.msra.mxu0 0.0
        %764 = vmatprep.subr.mxu0 0.0
        %765 = vmatpush1.msra.mxu0 0.0
        %766 = vmatprep.subr.mxu0 0.0
        %767 = vmatpush1.msra.mxu0 0.0
        %768 = vmatprep.subr.mxu0 0.0
        %769 = vmatpush1.msra.mxu0 0.0
        %770 = vmatprep.subr.mxu0 0.0
        %771 = vmatpush1.msra.mxu0 0.0
        %772 = vmatprep.subr.mxu0 0.0
        %773 = vmatpush1.msra.mxu0 0.0
        %774 = vmatprep.subr.mxu0 0.0
        %775 = vmatpush1.msra.mxu0 0.0
        %776 = vmatprep.subr.mxu0 0.0
        %777 = vmatpush1.msra.mxu0 0.0
        %778 = vmatprep.subr.mxu0 0.0
        %779 = vmatpush1.msra.mxu0 0.0
        %780 = vmatprep.subr.mxu0 0.0
        %781 = vmatpush1.msra.mxu0 0.0
        %782 = vmatprep.subr.mxu0 0.0
        %783 = vmatpush1.msra.mxu0 0.0
        %784 = vmatprep.subr.mxu0 0.0
        %785 = vmatpush1.msra.mxu0 0.0
        %786 = vmatprep.subr.mxu0 0.0
        %787 = vmatpush1.msra.mxu0 0.0
        %788 = vmatprep.mubr.f32.mxu0 0.0
        %789 = vmatmul.mubr.f32.gmra.mrb[0].mxu0 %v722
        %v790 = vpop.f32.mrb[0].mxu0
        %v791 = vadd.f32 0.0, %v790
        %v792 = vpop.f32.mrb[0].mxu0
        %793 = vdwg.mxu0
        %v795 = vsel %vm720, %v709, 0
        %797 = vmatprep.subr.mxu0 0.0
        %798 = vmatpush1.msra.mxu0 %v712
        %799 = vmatprep.subr.mxu0 0.0
        %800 = vmatpush1.msra.mxu0 %v713
        %801 = vmatprep.subr.mxu0 0.0
        %802 = vmatpush1.msra.mxu0 %v714
        %803 = vmatprep.subr.mxu0 0.0
        %804 = vmatpush1.msra.mxu0 %v715
        %805 = vmatprep.subr.mxu0 0.0
        %806 = vmatpush1.msra.mxu0 0.0
        %807 = vmatprep.subr.mxu0 0.0
        %808 = vmatpush1.msra.mxu0 0.0
        %809 = vmatprep.subr.mxu0 0.0
        %810 = vmatpush1.msra.mxu0 0.0
        %811 = vmatprep.subr.mxu0 0.0
        %812 = vmatpush1.msra.mxu0 0.0
        %813 = vmatprep.subr.mxu0 0.0
        %814 = vmatpush1.msra.mxu0 0.0
        %815 = vmatprep.subr.mxu0 0.0
        %816 = vmatpush1.msra.mxu0 0.0
        %817 = vmatprep.subr.mxu0 0.0
        %818 = vmatpush1.msra.mxu0 0.0
        %819 = vmatprep.subr.mxu0 0.0
        %820 = vmatpush1.msra.mxu0 0.0
        %821 = vmatprep.subr.mxu0 0.0
        %822 = vmatpush1.msra.mxu0 0.0
        %823 = vmatprep.subr.mxu0 0.0
        %824 = vmatpush1.msra.mxu0 0.0
        %825 = vmatprep.subr.mxu0 0.0
        %826 = vmatpush1.msra.mxu0 0.0
        %827 = vmatprep.subr.mxu0 0.0
        %828 = vmatpush1.msra.mxu0 0.0
        %829 = vmatprep.subr.mxu0 0.0
        %830 = vmatpush1.msra.mxu0 0.0
        %831 = vmatprep.subr.mxu0 0.0
        %832 = vmatpush1.msra.mxu0 0.0
        %833 = vmatprep.subr.mxu0 0.0
        %834 = vmatpush1.msra.mxu0 0.0
        %835 = vmatprep.subr.mxu0 0.0
        %836 = vmatpush1.msra.mxu0 0.0
        %837 = vmatprep.subr.mxu0 0.0
        %838 = vmatpush1.msra.mxu0 0.0
        %839 = vmatprep.subr.mxu0 0.0
        %840 = vmatpush1.msra.mxu0 0.0
        %841 = vmatprep.subr.mxu0 0.0
        %842 = vmatpush1.msra.mxu0 0.0
        %843 = vmatprep.subr.mxu0 0.0
        %844 = vmatpush1.msra.mxu0 0.0
        %845 = vmatprep.subr.mxu0 0.0
        %846 = vmatpush1.msra.mxu0 0.0
        %847 = vmatprep.subr.mxu0 0.0
        %848 = vmatpush1.msra.mxu0 0.0
        %849 = vmatprep.subr.mxu0 0.0
        %850 = vmatpush1.msra.mxu0 0.0
        %851 = vmatprep.subr.mxu0 0.0
        %852 = vmatpush1.msra.mxu0 0.0
        %853 = vmatprep.subr.mxu0 0.0
        %854 = vmatpush1.msra.mxu0 0.0
        %855 = vmatprep.subr.mxu0 0.0
        %856 = vmatpush1.msra.mxu0 0.0
        %857 = vmatprep.subr.mxu0 0.0
        %858 = vmatpush1.msra.mxu0 0.0
        %859 = vmatprep.subr.mxu0 0.0
        %860 = vmatpush1.msra.mxu0 0.0
        %861 = vmatprep.mubr.f32.mxu0 0.0
        %862 = vmatmul.mubr.f32.gmra.mrb[0].mxu0 %v795
        %v863 = vpop.f32.mrb[0].mxu0
        %v864 = vadd.f32 %v791, %v863
        %v865 = vpop.f32.mrb[0].mxu0
        %866 = vdwg.mxu0
        %v867 = vld [vmem:[%s5] sm:$0x1]
        %v869 = vlaneseq
        %v870 = vshrl.u32 %v869, 7
        %v871 = vsub.s32 0, %v870
        %v872 = vrot.slane %v867, %v871
        %v874 = vadd.f32 %v864, %v872
        %875 = vst [vmem:[%s189] sm:$0xff] %v874
        %s876 = sand.u32 %s101, 1
        %s877 = scalar_lea.sflag [#allocation10], %s876
        %s878 = sand.u32 %s101, 1
        %s879 = smul.addr %s878, 8
        %s880 = scalar_lea.vmem [#allocation13], %s879
        // Predicated region
        $region177: #{tpu_custom_call.1} parent=31 // pred_check
          %p881 = pneg %p111
        $region178: #{tpu_custom_call.1} parent=31 // pred_check_branch
          %883 = sbr.rel (%p881) target = $region180
        $region179: #{tpu_custom_call.1} parent=31 // pred_region
          %s885 = ssub.s32 128, 128
          %886 = vsyncadd %s877, %s885
          %s887 = smul.addr %s30, 128
          %s888 = scalar_lea.hbm %s6, %s887
          %s890 = sshll.u32 %s880, 4
          %s891 = int_to_ptr.vmem [resolvable:$true] %s890
          %893 = dma.vmem_to_hbm [thread:$0]  %s891, 128, %s888, %s877
        $region180: #{tpu_custom_call.1} parent=31 // pred_fallthru
          _
      $region32: #{tpu_custom_call.1} parent=5 // pred_fallthru
        _
      %p894 = scmp.le.s32.totalorder 2, %s25
      // Predicated region
      $region181: #{tpu_custom_call.1} parent=5 // pred_check
        %p895 = pneg %p894
      $region182: #{tpu_custom_call.1} parent=5 // pred_check_branch
        %897 = sbr.rel (%p895) target = $region184
      $region183: #{tpu_custom_call.1} parent=5 // pred_region
        %s898 = ssub.s32 %s25, 2
        // Predicated region
        $region185: #{tpu_custom_call.1} parent=183 // pred_check
          %p899 = pneg %p117
        $region186: #{tpu_custom_call.1} parent=183 // pred_check_branch
          %901 = sbr.rel (%p899) target = $region188
        $region187: #{tpu_custom_call.1} parent=183 // pred_region
          %s902 = sand.u32 %s102, 1
          %s903 = scalar_lea.sflag [#allocation10], %s902
          %s904 = sand.u32 %s102, 1
          %s905 = smul.addr %s904, 8
          %s906 = scalar_lea.vmem [#allocation13], %s905
          %907 = dma.done %s903, 128
        $region188: #{tpu_custom_call.1} parent=183 // pred_fallthru
          _
      $region184: #{tpu_custom_call.1} parent=5 // pred_fallthru
        _
    $region6: #{tpu_custom_call.1} parent=1 // loop_footer
      %s29 = sadd.s32 1, %s25
    $region7: #{tpu_custom_call.1} parent=1 // loop_footer_branch
      %24 = sbr.rel target = $region3
    $region8: #{tpu_custom_call.1} parent=1 // loop_exit
      _
    %908 = vsyncpa [#allocation9], 1
    %s909 = scalar_lea.sflag [#allocation9], 1
    %910 = vsyncpa %s909, 1
    %911 = vsyncpa [#allocation12], 1
    %912 = vsyncpa [#allocation10], 1
    %s913 = scalar_lea.sflag [#allocation10], 1
    %914 = vsyncpa %s913, 1
  %915 = vsyncmov [#allocation4]
  %s916 = vpop.sfrf %915
  %p917 = scmp.eq.s32.totalorder %s916, 0
  %p918 = pneg %p917
  %920 = shalt.err (%p918)
  %s921 = scalar_lea.sflag [#allocation4], 1
  %922 = vsyncmov %s921
  %s923 = vpop.sfrf %922
  %p924 = scmp.eq.s32.totalorder %s923, 0
  %p925 = pneg %p924
  %927 = shalt.err (%p925)
  %s928 = scalar_lea.sflag [#allocation4], 2
  %929 = vsyncmov %s928
  %s930 = vpop.sfrf %929
  %p931 = scmp.eq.s32.totalorder %s930, 0
  %p932 = pneg %p931
  %934 = shalt.err (%p932)
  %s935 = scalar_lea.sflag [#allocation4], 3
  %936 = vsyncmov %s935
  %s937 = vpop.sfrf %936
  %p938 = scmp.eq.s32.totalorder %s937, 0
  %p939 = pneg %p938
  %941 = shalt.err (%p939)

</llo_original>
